<compile_context>
chip_gen: v7x
topology: tpu7x:2x2x1
jax: 0.10.0
libtpu: 0.0.40
codegen_flags: <defaults>
</compile_context>

<pallas_src>
import math

import numpy as np
import jax
import jax.numpy as jnp
from jax.experimental import pallas as pl
from jax.experimental.pallas import tpu as pltpu

# ----------------------------- densenet161 config ---------------------------
GROWTH_RATE = 48
NUM_INIT_FEATURES = 96
BN_SIZE = 4
BLOCK_CONFIG = (6, 12, 36, 24)
NUM_CLASSES = 7
BN_EPS = 1e-5
BOTTLENECK = BN_SIZE * GROWTH_RATE          # 192
ACT_DTYPE = jnp.bfloat16                    # activation storage dtype


def _round_up(x, m):
    return ((x + m - 1) // m) * m


# ------------------------- generation-aware VMEM budget ----------------------
def _detect_vmem_capacity():
    try:
        info = pltpu.get_tpu_info()
        for attr in ("vmem_capacity_bytes", "vmem_bytes", "vmem_size_bytes"):
            v = getattr(info, attr, None)
            if v:
                return int(v)
    except Exception:
        pass
    return 128 * 1024 * 1024                 # v5e / v6e physical VMEM


VMEM_CAPACITY = _detect_vmem_capacity()
# ~46 MiB scoped budget on v7x (64 MiB physical), ~92 MiB on v5e/v6e (128 MiB);
# always well above the 16/32 MiB scoped defaults.
VMEM_BUDGET = min(int(VMEM_CAPACITY * 0.72), 96 * 1024 * 1024)


def _row_tile(m, bytes_per_row, fixed_bytes, prefer_split=True):
    """Largest row tile (divisor of m; multiple of 8 unless == m) whose VMEM
    footprint fits the budget.  Prefers >=2 grid steps on large m so both
    TensorCores get work on dual-core chips (v7x); the extra ~0.35us/step is
    noise on single-core chips."""
    budget = VMEM_BUDGET - fixed_bytes - (2 << 20)
    divs = [d for d in range(8, m, 8) if m % d == 0] + [m]
    fit = [d for d in divs if d * bytes_per_row <= budget]
    if not fit:
        return divs[0]
    if prefer_split and m >= 1024:
        split = [d for d in fit if d < m]
        if split:
            return max(split)
    return max(fit)


# ----------------------------- fused matmul kernel ---------------------------
def _mm_kernel(in_affine, out_affine, out_relu):
    """C = epi(pro(A) @ B): BN/ReLU folded as per-channel affines."""

    def kernel(*refs):
        i = 0
        a_ref = refs[i]; i += 1
        b_ref = refs[i]; i += 1
        a = a_ref[...]
        if in_affine:                      # prologue: per-K-channel BN + ReLU
            isc, ish = refs[i][...], refs[i + 1][...]; i += 2
            a = jnp.maximum(a.astype(jnp.float32) * isc + ish, 0.0)
        if out_affine:
            osc, osh = refs[i][...], refs[i + 1][...]; i += 2
        o_ref = refs[i]
        acc = jnp.dot(a.astype(jnp.bfloat16), b_ref[...],
                      preferred_element_type=jnp.float32)
        if out_affine:                     # epilogue: per-N-channel BN (+ReLU)
            acc = acc * osc + osh
        if out_relu:
            acc = jnp.maximum(acc, 0.0)
        o_ref[...] = acc.astype(o_ref.dtype)

    return kernel


def fused_matmul(a, b, *, k_used=None, in_ss=None, out_ss=None,
                 out_relu=False, out_dtype=ACT_DTYPE):
    """C = epi(pro(A[:, :k_used]) @ B).

    `k_used` lets the kernel read only the first K columns of a wider channel
    buffer straight from HBM via its BlockSpec (no XLA slice copy)."""
    m, k_full = a.shape
    k = k_used if k_used is not None else k_full
    assert b.shape[0] == k, (b.shape, k)
    n = b.shape[1]
    # K tile must be lane-aligned unless it spans the whole array width.
    assert k == k_full or k % 128 == 0, (k, k_full)
    in_affine = in_ss is not None
    out_affine = out_ss is not None
    out_bytes = jnp.dtype(out_dtype).itemsize
    # per-row VMEM: double-buffered A + out, plus f32/bf16 prologue temps.
    bytes_per_row = 2 * k * 2 + 2 * n * out_bytes + (6 * k if in_affine else 0)
    fixed = 2 * k * n * 2 + 16 * (k + n)
    tm = _row_tile(m, bytes_per_row, fixed)

    in_specs = [pl.BlockSpec((tm, k), lambda i: (i, 0)),
                pl.BlockSpec((k, n), lambda i: (0, 0))]
    args = [a, b]
    if in_affine:
        in_specs += [pl.BlockSpec((1, k), lambda i: (0, 0))] * 2
        args += list(in_ss)
    if out_affine:
        in_specs += [pl.BlockSpec((1, n), lambda i: (0, 0))] * 2
        args += list(out_ss)
    return pl.pallas_call(
        _mm_kernel(in_affine, out_affine, out_relu),
        out_shape=jax.ShapeDtypeStruct((m, n), out_dtype),
        grid=(m // tm,),
        in_specs=in_specs,
        out_specs=pl.BlockSpec((tm, n), lambda i: (i, 0)),
        compiler_params=pltpu.CompilerParams(
            dimension_semantics=("parallel",),
            vmem_limit_bytes=VMEM_BUDGET),
    )(*args)


# --------------------- direct-read 3x3 convolution kernel --------------------
def _conv3x3_kernel(x_ref, w_ref, o_ref, acc_ref):
    h, w, cout = o_ref.shape
    wp = w + 2
    cin = x_ref.shape[-1]
    acc_ref[...] = jnp.zeros_like(acc_ref)
    # Vertical taps: one lane-dense (Cin x 3*Cout) matmul per tap over the
    # contiguous padded-width rows (no im2col, no strided reshapes).
    for dh in range(3):
        xs = x_ref[dh:dh + h, :, :].reshape(h * wp, cin)
        ys = jnp.dot(xs, w_ref[dh], preferred_element_type=jnp.float32)
        acc_ref[...] += ys.reshape(h, wp, 3 * cout)
    # Horizontal taps: shifted add of the three Cout-wide column groups.
    o_ref[...] = (acc_ref[:, 0:w, 0:cout]
                  + acc_ref[:, 1:w + 1, cout:2 * cout]
                  + acc_ref[:, 2:w + 2, 2 * cout:3 * cout]).astype(o_ref.dtype)


def conv3x3(x_padded, w_rows):
    """3x3 / stride-1 conv reading the spatially zero-padded NHWC map directly.

    x_padded: (N, H+2, W+2, Cin) bf16
    w_rows:   (3, Cin, 3*Cout) bf16  (vertical-tap major, horizontal taps
              concatenated along the output channels)
    returns   (N, H, W, Cout) bf16
    """
    n, hp, wp, cin = x_padded.shape
    h, w = hp - 2, wp - 2
    cout = w_rows.shape[-1] // 3
    return pl.pallas_call(
        _conv3x3_kernel,
        out_shape=jax.ShapeDtypeStruct((n, h, w, cout), ACT_DTYPE),
        grid=(n,),
        in_specs=[pl.BlockSpec((None, hp, wp, cin), lambda i: (i, 0, 0, 0)),
                  pl.BlockSpec((3, cin, 3 * cout), lambda i: (0, 0, 0))],
        out_specs=pl.BlockSpec((None, h, w, cout), lambda i: (i, 0, 0, 0)),
        scratch_shapes=[pltpu.VMEM((h, wp, 3 * cout), jnp.float32)],
        compiler_params=pltpu.CompilerParams(
            dimension_semantics=("parallel",),
            vmem_limit_bytes=VMEM_BUDGET),
    )(x_padded, w_rows)


# ----------------------------- pooling kernel --------------------------------
def _pool_kernel(op, affine):
    """Reduce (rows, window, C) over the window axis; optional BN+ReLU first."""

    def kernel(*refs):
        i = 0
        x_ref = refs[i]; i += 1
        x = x_ref[...].astype(jnp.float32)
        if affine:
            sc, sh = refs[i][...], refs[i + 1][...]; i += 2
            x = jnp.maximum(x * sc + sh, 0.0)
        o_ref = refs[i]
        r = jnp.max(x, axis=1) if op == "max" else jnp.mean(x, axis=1)
        o_ref[...] = r.astype(o_ref.dtype)

    return kernel


def pool_reduce(windows, op, in_ss=None, out_dtype=ACT_DTYPE):
    """windows: (rows, window, C) -> (rows, C) reduced over the window axis."""
    m, kw, c = windows.shape
    affine = in_ss is not None
    out_bytes = jnp.dtype(out_dtype).itemsize
    bytes_per_row = kw * c * (2 * 2 + 4) + 2 * c * out_bytes
    tp = _row_tile(m, bytes_per_row, 16 * c)
    in_specs = [pl.BlockSpec((tp, kw, c), lambda i: (i, 0, 0))]
    args = [windows]
    if affine:
        in_specs += [pl.BlockSpec((1, 1, c), lambda i: (0, 0, 0))] * 2
        args += list(in_ss)
    return pl.pallas_call(
        _pool_kernel(op, affine),
        out_shape=jax.ShapeDtypeStruct((m, c), out_dtype),
        grid=(m // tp,),
        in_specs=in_specs,
        out_specs=pl.BlockSpec((tp, c), lambda i: (i, 0)),
        compiler_params=pltpu.CompilerParams(
            dimension_semantics=("parallel",),
            vmem_limit_bytes=VMEM_BUDGET),
    )(*args)


# ----------------------------- XLA glue (stem im2col) ------------------------
def _extract_patches(x, kh, kw, stride, padding=0, pad_value=0.0):
    """NHWC -> (N*Ho*Wo, kh*kw*C) flattened patches (stem only)."""
    if padding:
        x = jnp.pad(x, ((0, 0), (padding, padding), (padding, padding), (0, 0)),
                    constant_values=pad_value)
    n, hp, wp, c = x.shape
    ho = (hp - kh) // stride + 1
    wo = (wp - kw) // stride + 1
    cols = []
    for dh in range(kh):
        for dw in range(kw):
            cols.append(jax.lax.slice(
                x, (0, dh, dw, 0),
                (n, dh + (ho - 1) * stride + 1, dw + (wo - 1) * stride + 1, c),
                (1, stride, stride, 1)))
    out = jnp.concatenate(cols, axis=-1)
    return out.reshape(n * ho * wo, kh * kw * c), ho, wo


# ----------------------------------- model -----------------------------------
def densenet_forward(x_nchw, params):
    """Matches DenseNet.forward: features(x) -> ReLU -> AvgPool2d(7) -> fc."""
    x = jnp.transpose(x_nchw, (0, 2, 3, 1)).astype(ACT_DTYPE)   # NCHW -> NHWC
    n = x.shape[0]

    # --- stem: conv0 7x7/s2 (fused norm0+relu) + maxpool 3x3/s2 (pad -inf) ---
    # TODO(synk): replace the stem im2col / window materialisation with
    # direct-read tap-accumulating kernels.
    p0, h, w = _extract_patches(x, 7, 7, 2, padding=3)
    x = fused_matmul(p0, params["conv0"], out_ss=params["bn0"], out_relu=True)
    x = x.reshape(n, h, w, NUM_INIT_FEATURES)
    wins, h, w = _extract_patches(x, 3, 3, 2, padding=1,
                                  pad_value=float("-inf"))
    x_flat = pool_reduce(wins.reshape(n * h * w, 9, NUM_INIT_FEATURES), "max")

    # --- dense blocks + transitions ------------------------------------------
    c = NUM_INIT_FEATURES
    buf = None
    for bp in params["blocks"]:
        layers = bp["layers"]
        c_pad = _round_up(c + len(layers) * GROWTH_RATE, 128)
        m = n * h * w
        # Persistent channel-append buffer for the whole block.  The zero tail
        # keeps padded-K reads exact (matching BN scale/shift entries are zero).
        buf = jnp.pad(x_flat, ((0, 0), (0, c_pad - c)))
        for lp in layers:
            # conv1 (1x1) reads the first k_in columns of the block buffer
            # directly; norm1+relu fused as prologue, norm2+relu as epilogue.
            bott = fused_matmul(buf, lp["w1"], k_used=lp["w1"].shape[0],
                                in_ss=lp["bn1"], out_ss=lp["bn2"],
                                out_relu=True)
            # conv2 (3x3, pad 1): direct-read kernel on the zero-padded
            # post-relu bottleneck map (matches the PyTorch op order).
            bott = jnp.pad(bott.reshape(n, h, w, BOTTLENECK),
                           ((0, 0), (1, 1), (1, 1), (0, 0)))
            new = conv3x3(bott, lp["w2"])                       # (n, h, w, 48)
            buf = jax.lax.dynamic_update_slice_in_dim(
                buf, new.reshape(m, GROWTH_RATE), c, axis=1)
            c += GROWTH_RATE
        if bp["trans"] is not None:
            tw = bp["trans"]["w"]
            n_out = tw.shape[1]
            # transition: norm+relu fused prologue, exact (unpadded) N.
            hconv = fused_matmul(buf, tw, k_used=tw.shape[0],
                                 in_ss=bp["trans"]["bn"])
            # 2x2/s2 average pool (XLA reshape+mean, memory-bound & cheap).
            t5 = hconv.reshape(n, h // 2, 2, w // 2, 2, n_out)
            x_flat = jnp.mean(t5.astype(jnp.float32),
                              axis=(2, 4)).astype(ACT_DTYPE)
            h, w = h // 2, w // 2
            x_flat = x_flat.reshape(n * h * w, n_out)
            c = n_out

    # --- head: norm5 + forward()'s ReLU fused into the global average pool,
    #     classifier bias fused as the matmul epilogue -------------------------
    assert (h, w) == (7, 7), "AvgPool2d(7) needs a 7x7 map (224x224 input)"
    c_pad = buf.shape[1]
    pooled = pool_reduce(buf.reshape(n, h * w, c_pad), "mean",
                         in_ss=params["bn5"], out_dtype=jnp.float32)
    return fused_matmul(pooled, params["fc_w"],
                        out_ss=(params["fc_scale"], params["fc_bias"]),
                        out_dtype=jnp.float32)


# ----------------------------- deterministic parameters ----------------------
def init_params(seed=0):
    rng = np.random.RandomState(seed)

    def kaiming(shape, fan_in):
        return (rng.standard_normal(shape).astype(np.float32)
                * np.float32(math.sqrt(2.0 / fan_in)))

    def conv_w2d(kh, kw, cin, cout, k_pad_to=None):
        wgt = kaiming((kh, kw, cin, cout),
                      kh * kw * cin).reshape(kh * kw * cin, cout)
        if k_pad_to is not None and k_pad_to > wgt.shape[0]:
            wgt = np.pad(wgt, ((0, k_pad_to - wgt.shape[0]), (0, 0)))
        return jnp.asarray(wgt, dtype=jnp.bfloat16)

    def bn_ss(c, pad_to=None, lead=(1,)):
        # torchvision init: gamma=1, beta=0, running_mean=0, running_var=1.
        gamma = np.ones((c,), np.float32)
        beta = np.zeros((c,), np.float32)
        mean = np.zeros((c,), np.float32)
        var = np.ones((c,), np.float32)
        scale = gamma / np.sqrt(var + BN_EPS)
        shift = beta - mean * scale
        pad_to = pad_to or c
        scale = np.pad(scale, (0, pad_to - c))
        shift = np.pad(shift, (0, pad_to - c))
        shp = tuple(lead) + (pad_to,)
        return (jnp.asarray(scale.reshape(shp)),
                jnp.asarray(shift.reshape(shp)))

    params = {"conv0": conv_w2d(7, 7, 3, NUM_INIT_FEATURES),
              "bn0": bn_ss(NUM_INIT_FEATURES),
              "blocks": []}
    c = NUM_INIT_FEATURES
    for bi, num_layers in enumerate(BLOCK_CONFIG):
        c_pad = _round_up(c + num_layers * GROWTH_RATE, 128)
        # K granularity: 128 (lane minimum) in the large early blocks where
        # padded-channel DMA waste matters; 256 in the tiny late blocks to
        # halve the number of compiled conv1 variants (<1% waste there).
        granule = 128 if bi < 2 else 256
        layers = []
        for _ in range(num_layers):
            k_in = min(_round_up(c, granule), c_pad)
            w2 = kaiming((3, 3, BOTTLENECK, GROWTH_RATE), 9 * BOTTLENECK)
            w2 = np.transpose(w2, (0, 2, 1, 3)).reshape(
                3, BOTTLENECK, 3 * GROWTH_RATE)       # row-tap major layout
            layers.append({
                "bn1": bn_ss(c, k_in),
                "w1": conv_w2d(1, 1, c, BOTTLENECK, k_in),
                "bn2": bn_ss(BOTTLENECK),
                "w2": jnp.asarray(w2, dtype=jnp.bfloat16),
            })
            c += GROWTH_RATE
        trans = None
        if bi != len(BLOCK_CONFIG) - 1:
            n_out = c // 2
            trans = {"bn": bn_ss(c, c_pad),
                     "w": conv_w2d(1, 1, c, n_out, c_pad)}   # exact N, no pad
            c = n_out
        params["blocks"].append({"layers": layers, "trans": trans})

    assert c == 2208, c                             # densenet161 feature width
    c_pad = _round_up(c, 128)
    params["bn5"] = bn_ss(c, c_pad, lead=(1, 1))
    bound = 1.0 / math.sqrt(c)                      # nn.Linear default init
    fc_w = rng.uniform(-bound, bound, (c, NUM_CLASSES)).astype(np.float32)
    fc_w = np.pad(fc_w, ((0, c_pad - c), (0, 0)))
    params["fc_w"] = jnp.asarray(fc_w, dtype=jnp.bfloat16)
    params["fc_bias"] = jnp.asarray(
        rng.uniform(-bound, bound, (1, NUM_CLASSES)).astype(np.float32))
    params["fc_scale"] = jnp.ones((1, NUM_CLASSES), jnp.float32)
    return params


# ------------------------------------ main ------------------------------------
if __name__ == "__main__":
    keys = jax.random.split(jax.random.PRNGKey(0), 3)

    # Sanity check: direct-read 3x3 Pallas conv vs XLA's reference conv.
    xt = jax.random.normal(keys[1], (1, 10, 10, BOTTLENECK),
                           jnp.float32).astype(ACT_DTYPE)
    wt = jax.random.normal(keys[2], (3, 3, BOTTLENECK, GROWTH_RATE),
                           jnp.float32).astype(jnp.bfloat16)
    xp = jnp.pad(xt, ((0, 0), (1, 1), (1, 1), (0, 0)))
    w_rows = jnp.transpose(wt, (0, 2, 1, 3)).reshape(
        3, BOTTLENECK, 3 * GROWTH_RATE)
    got = conv3x3(xp, w_rows)
    ref = jax.lax.conv_general_dilated(
        xt, wt, (1, 1), ((1, 1), (1, 1)),
        dimension_numbers=("NHWC", "HWIO", "NHWC"),
        preferred_element_type=jnp.float32)
    np.testing.assert_allclose(np.asarray(got.astype(jnp.float32)),
                               np.asarray(ref), rtol=3e-2, atol=3e-1)

    params = init_params(seed=0)

    # Input implied by the forward pass: 3-channel 224x224 images (AvgPool2d(7)
    # over the final 7x7 feature map requires /32 downsampling from 224x224).
    x = jax.random.normal(keys[0], (2, 3, 224, 224), jnp.float32)
    fwd = jax.jit(densenet_forward)
    logits = jax.block_until_ready(fwd(x, params))
    assert logits.shape == (2, NUM_CLASSES) and logits.dtype == jnp.float32
    assert bool(jnp.all(jnp.isfinite(logits)))
    print("KERNEL_OK")
</pallas_src>

<mosaic_0001>
module attributes {stable_mosaic.version = 11 : i64} {
  func.func @_conv3x3_kernel(%arg0: i32, %arg1: memref<1x12x12x192xbf16, #tpu.memory_space<vmem>>, %arg2: memref<3x192x144xbf16, #tpu.memory_space<vmem>>, %arg3: memref<1x10x10x48xbf16, #tpu.memory_space<vmem>>, %arg4: memref<10x12x144xf32, #tpu.memory_space<vmem>>) attributes {dimension_semantics = [#tpu.dimension_semantics<parallel>], iteration_bounds = array<i64: 1>, scalar_prefetch = 0 : i64, scratch_operands = 1 : i64, tpu.core_type = #tpu.core_type<tc>, window_params = [{transform_indices = @transform_0, window_bounds = array<i64: 1, 12, 12, 192>}, {pipeline_mode = #tpu.pipeline_mode<synchronous>, transform_indices = @transform_1, window_bounds = array<i64: 3, 192, 144>}, {transform_indices = @transform_2, window_bounds = array<i64: 1, 10, 10, 48>}]} {
    %cst = arith.constant 0.000000e+00 : f32
    %0 = vector.broadcast %cst : f32 to vector<10x12x144xf32>
    %c0 = arith.constant 0 : index
    %c0_0 = arith.constant 0 : index
    %c0_1 = arith.constant 0 : index
    %1 = vector.load %arg4[%c0, %c0_0, %c0_1] : memref<10x12x144xf32, #tpu.memory_space<vmem>>, vector<10x12x144xf32>
    tpu.vector_store %arg4[%c0, %c0_0, %c0_1], %0 {strides = array<i32>} : memref<10x12x144xf32, #tpu.memory_space<vmem>>, vector<10x12x144xf32>,
    %c0_2 = arith.constant 0 : index
    %c0_3 = arith.constant 0 : index
    %c0_4 = arith.constant 0 : index
    %c0_5 = arith.constant 0 : index
    %2 = vector.load %arg1[%c0_2, %c0_3, %c0_4, %c0_5] : memref<1x12x12x192xbf16, #tpu.memory_space<vmem>>, vector<1x10x12x192xbf16>
    %3 = vector.shape_cast %2 : vector<1x10x12x192xbf16> to vector<10x12x192xbf16>
    %4 = vector.shape_cast %3 : vector<10x12x192xbf16> to vector<120x192xbf16>
    %c0_6 = arith.constant 0 : index
    %c0_7 = arith.constant 0 : index
    %c0_8 = arith.constant 0 : index
    %5 = vector.load %arg2[%c0_6, %c0_7, %c0_8] : memref<3x192x144xbf16, #tpu.memory_space<vmem>>, vector<1x192x144xbf16>
    %6 = vector.shape_cast %5 : vector<1x192x144xbf16> to vector<192x144xbf16>
    %cst_9 = arith.constant dense<0.000000e+00> : vector<120x144xf32>
    %7 = tpu.matmul %4, %6, %cst_9 {dimension_numbers = #tpu.dot_dimension_numbers<[1], [0], [0], [1], [0, 0, 1, 1], [], []>} : vector<120x192xbf16>, vector<192x144xbf16>, vector<120x144xf32> -> vector<120x144xf32>
    %c0_10 = arith.constant 0 : index
    %c0_11 = arith.constant 0 : index
    %c0_12 = arith.constant 0 : index
    %8 = vector.load %arg4[%c0_10, %c0_11, %c0_12] : memref<10x12x144xf32, #tpu.memory_space<vmem>>, vector<10x12x144xf32>
    %9 = vector.shape_cast %7 : vector<120x144xf32> to vector<10x12x144xf32>
    %10 = arith.addf %8, %9 : vector<10x12x144xf32>
    %c0_13 = arith.constant 0 : index
    %c0_14 = arith.constant 0 : index
    %c0_15 = arith.constant 0 : index
    %11 = vector.load %arg4[%c0_13, %c0_14, %c0_15] : memref<10x12x144xf32, #tpu.memory_space<vmem>>, vector<10x12x144xf32>
    tpu.vector_store %arg4[%c0_13, %c0_14, %c0_15], %10 {strides = array<i32>} : memref<10x12x144xf32, #tpu.memory_space<vmem>>, vector<10x12x144xf32>,
    %c0_16 = arith.constant 0 : index
    %c1 = arith.constant 1 : index
    %c0_17 = arith.constant 0 : index
    %c0_18 = arith.constant 0 : index
    %12 = vector.load %arg1[%c0_16, %c1, %c0_17, %c0_18] : memref<1x12x12x192xbf16, #tpu.memory_space<vmem>>, vector<1x10x12x192xbf16>
    %13 = vector.shape_cast %12 : vector<1x10x12x192xbf16> to vector<10x12x192xbf16>
    %14 = vector.shape_cast %13 : vector<10x12x192xbf16> to vector<120x192xbf16>
    %c1_19 = arith.constant 1 : index
    %c0_20 = arith.constant 0 : index
    %c0_21 = arith.constant 0 : index
    %15 = vector.load %arg2[%c1_19, %c0_20, %c0_21] : memref<3x192x144xbf16, #tpu.memory_space<vmem>>, vector<1x192x144xbf16>
    %16 = vector.shape_cast %15 : vector<1x192x144xbf16> to vector<192x144xbf16>
    %cst_22 = arith.constant dense<0.000000e+00> : vector<120x144xf32>
    %17 = tpu.matmul %14, %16, %cst_22 {dimension_numbers = #tpu.dot_dimension_numbers<[1], [0], [0], [1], [0, 0, 1, 1], [], []>} : vector<120x192xbf16>, vector<192x144xbf16>, vector<120x144xf32> -> vector<120x144xf32>
    %c0_23 = arith.constant 0 : index
    %c0_24 = arith.constant 0 : index
    %c0_25 = arith.constant 0 : index
    %18 = vector.load %arg4[%c0_23, %c0_24, %c0_25] : memref<10x12x144xf32, #tpu.memory_space<vmem>>, vector<10x12x144xf32>
    %19 = vector.shape_cast %17 : vector<120x144xf32> to vector<10x12x144xf32>
    %20 = arith.addf %18, %19 : vector<10x12x144xf32>
    %c0_26 = arith.constant 0 : index
    %c0_27 = arith.constant 0 : index
    %c0_28 = arith.constant 0 : index
    %21 = vector.load %arg4[%c0_26, %c0_27, %c0_28] : memref<10x12x144xf32, #tpu.memory_space<vmem>>, vector<10x12x144xf32>
    tpu.vector_store %arg4[%c0_26, %c0_27, %c0_28], %20 {strides = array<i32>} : memref<10x12x144xf32, #tpu.memory_space<vmem>>, vector<10x12x144xf32>,
    %c0_29 = arith.constant 0 : index
    %c2 = arith.constant 2 : index
    %c0_30 = arith.constant 0 : index
    %c0_31 = arith.constant 0 : index
    %22 = vector.load %arg1[%c0_29, %c2, %c0_30, %c0_31] : memref<1x12x12x192xbf16, #tpu.memory_space<vmem>>, vector<1x10x12x192xbf16>
    %23 = vector.shape_cast %22 : vector<1x10x12x192xbf16> to vector<10x12x192xbf16>
    %24 = vector.shape_cast %23 : vector<10x12x192xbf16> to vector<120x192xbf16>
    %c2_32 = arith.constant 2 : index
    %c0_33 = arith.constant 0 : index
    %c0_34 = arith.constant 0 : index
    %25 = vector.load %arg2[%c2_32, %c0_33, %c0_34] : memref<3x192x144xbf16, #tpu.memory_space<vmem>>, vector<1x192x144xbf16>
    %26 = vector.shape_cast %25 : vector<1x192x144xbf16> to vector<192x144xbf16>
    %cst_35 = arith.constant dense<0.000000e+00> : vector<120x144xf32>
    %27 = tpu.matmul %24, %26, %cst_35 {dimension_numbers = #tpu.dot_dimension_numbers<[1], [0], [0], [1], [0, 0, 1, 1], [], []>} : vector<120x192xbf16>, vector<192x144xbf16>, vector<120x144xf32> -> vector<120x144xf32>
    %c0_36 = arith.constant 0 : index
    %c0_37 = arith.constant 0 : index
    %c0_38 = arith.constant 0 : index
    %28 = vector.load %arg4[%c0_36, %c0_37, %c0_38] : memref<10x12x144xf32, #tpu.memory_space<vmem>>, vector<10x12x144xf32>
    %29 = vector.shape_cast %27 : vector<120x144xf32> to vector<10x12x144xf32>
    %30 = arith.addf %28, %29 : vector<10x12x144xf32>
    %c0_39 = arith.constant 0 : index
    %c0_40 = arith.constant 0 : index
    %c0_41 = arith.constant 0 : index
    %31 = vector.load %arg4[%c0_39, %c0_40, %c0_41] : memref<10x12x144xf32, #tpu.memory_space<vmem>>, vector<10x12x144xf32>
    tpu.vector_store %arg4[%c0_39, %c0_40, %c0_41], %30 {strides = array<i32>} : memref<10x12x144xf32, #tpu.memory_space<vmem>>, vector<10x12x144xf32>,
    %c0_42 = arith.constant 0 : index
    %c0_43 = arith.constant 0 : index
    %c0_44 = arith.constant 0 : index
    %32 = vector.load %arg4[%c0_42, %c0_43, %c0_44] : memref<10x12x144xf32, #tpu.memory_space<vmem>>, vector<10x10x48xf32>
    %c0_45 = arith.constant 0 : index
    %c1_46 = arith.constant 1 : index
    %c48 = arith.constant 48 : index
    %33 = vector.load %arg4[%c0_45, %c1_46, %c48] : memref<10x12x144xf32, #tpu.memory_space<vmem>>, vector<10x10x48xf32>
    %34 = arith.addf %32, %33 : vector<10x10x48xf32>
    %c0_47 = arith.constant 0 : index
    %c2_48 = arith.constant 2 : index
    %c96 = arith.constant 96 : index
    %35 = vector.load %arg4[%c0_47, %c2_48, %c96] : memref<10x12x144xf32, #tpu.memory_space<vmem>>, vector<10x10x48xf32>
    %36 = arith.addf %34, %35 : vector<10x10x48xf32>
    %37 = arith.truncf %36 : vector<10x10x48xf32> to vector<10x10x48xbf16>
    %c0_49 = arith.constant 0 : index
    %c0_50 = arith.constant 0 : index
    %c0_51 = arith.constant 0 : index
    %c0_52 = arith.constant 0 : index
    %38 = vector.load %arg3[%c0_49, %c0_50, %c0_51, %c0_52] : memref<1x10x10x48xbf16, #tpu.memory_space<vmem>>, vector<1x10x10x48xbf16>
    %39 = vector.shape_cast %38 : vector<1x10x10x48xbf16> to vector<10x10x48xbf16>
    %40 = vector.shape_cast %37 : vector<10x10x48xbf16> to vector<1x10x10x48xbf16>
    tpu.vector_store %arg3[%c0_49, %c0_50, %c0_51, %c0_52], %40 {strides = array<i32>} : memref<1x10x10x48xbf16, #tpu.memory_space<vmem>>, vector<1x10x10x48xbf16>,
    return
  }
  func.func @transform_0(%arg0: i32) -> (i32, i32, i32, i32) {
    %c0_i32 = arith.constant 0 : i32
    %c0_i32_0 = arith.constant 0 : i32
    %c0_i32_1 = arith.constant 0 : i32
    %c0_i32_2 = arith.constant 0 : i32
    return %arg0, %c0_i32, %c0_i32_0, %c0_i32_1 : i32, i32, i32, i32
  }
  func.func @transform_1(%arg0: i32) -> (i32, i32, i32) {
    %c0_i32 = arith.constant 0 : i32
    %c0_i32_0 = arith.constant 0 : i32
    %c0_i32_1 = arith.constant 0 : i32
    %c0_i32_2 = arith.constant 0 : i32
    return %c0_i32, %c0_i32_0, %c0_i32_1 : i32, i32, i32
  }
  func.func @transform_2(%arg0: i32) -> (i32, i32, i32, i32) {
    %c0_i32 = arith.constant 0 : i32
    %c0_i32_0 = arith.constant 0 : i32
    %c0_i32_1 = arith.constant 0 : i32
    %c0_i32_2 = arith.constant 0 : i32
    return %arg0, %c0_i32, %c0_i32_0, %c0_i32_1 : i32, i32, i32, i32
  }
}

</mosaic_0001>

<llo_original>
// kernel: tpu_custom_call.1
$region0: #{tpu_custom_call.1}
  #allocation0 [shape = 'u32[]', space=smem, size = 0x4, offset = 0x4, fixed_abs, tag = 'smem constant byte address 0x4 - core index']
  #allocation1 [shape = 'u32[144,128]{1,0:T(1,128)}', space=vmem, size = 0x12000, scoped, tag = 'internal scratch']
  #allocation2 [shape = 'f32[10,12,144]{2,1,0:T(8,128)}', space=vmem, size = 0x28000, scoped, tag = 'scratch operand']
  %s0 = inlined_call_operand.hbm [shape: bf16[1,12,12,192], index: 0, kind: input, shape index: {}]
  %s1 = inlined_call_operand.hbm [shape: bf16[3,192,144], index: 1, kind: input, shape index: {}]
  %s2 = inlined_call_operand.hbm [shape: bf16[1,10,10,48], index: 2, kind: output, shape index: {}]
  %s3 = sld [smem:[#allocation0]]
  $region26: #{tpu_custom_call.1} parent=0
    _
  %s5 = ssub.s32 1, %s3
  %s6 = scalar_select 0, %s5, %s3
  $region1: #{tpu_custom_call.1} parent=0
    #allocation3 [shape = 'u8[98304]{0}', space=vmem, size = 0x18000, scoped, tag = 'input window, operand 0, single buffered']
    #allocation4 [shape = 's32[1]{0}', space=sflag, size = 0x4, scoped, tag = 'scoped memory for tpu_custom_call.1']
    #allocation5 [shape = 's32[1]{0}', space=sflag, size = 0x4, scoped, tag = 'scoped memory for tpu_custom_call.1']
    #allocation6 [shape = 'u8[294912]{0}', space=vmem, size = 0x48000, scoped, tag = 'input window, operand 1, single buffered']
    #allocation7 [shape = 's32[1]{0}', space=sflag, size = 0x4, scoped, tag = 'scoped memory for tpu_custom_call.1']
    #allocation8 [shape = 'u8[40960]{0}', space=vmem, size = 0xa000, scoped, tag = 'output window, operand 0, single buffered']
    %7 = vsyncpa [#allocation4], 0
    %8 = vsyncpa [#allocation7], 0
    %9 = vsyncpa [#allocation5], 0
    // Predicated region
    $region2: #{tpu_custom_call.1} parent=1 // pred_check
      _
    $region3: #{tpu_custom_call.1} parent=1 // pred_check_branch
      %11 = sbr.rel (0) target = $region5
    $region4: #{tpu_custom_call.1} parent=1 // pred_region
      %s13 = ssub.s32 3072, 3072
      %14 = vsyncadd [#allocation4], %s13
      %s15 = sshll.u32 [#allocation3], 4
      %s16 = int_to_ptr.vmem [resolvable:$true] %s15
      %21 = dma.hbm_to_vmem [thread:$0]  %s0, 3072, %s16, [#allocation4], 128, 128, 8
    $region5: #{tpu_custom_call.1} parent=1 // pred_fallthru
      _
    // Predicated region
    $region6: #{tpu_custom_call.1} parent=1 // pred_check
      _
    $region7: #{tpu_custom_call.1} parent=1 // pred_check_branch
      %23 = sbr.rel (0) target = $region9
    $region8: #{tpu_custom_call.1} parent=1 // pred_region
      %s25 = ssub.s32 9216, 9216
      %26 = vsyncadd [#allocation7], %s25
      %s27 = sshll.u32 [#allocation6], 4
      %s28 = int_to_ptr.vmem [resolvable:$true] %s27
      %33 = dma.hbm_to_vmem [thread:$0]  %s1, 9216, %s28, [#allocation7], 128, 128, 8
    $region9: #{tpu_custom_call.1} parent=1 // pred_fallthru
      _
    // Predicated region
    $region10: #{tpu_custom_call.1} parent=1 // pred_check
      _
    $region11: #{tpu_custom_call.1} parent=1 // pred_check_branch
      %35 = sbr.rel (0) target = $region13
    $region12: #{tpu_custom_call.1} parent=1 // pred_region
      %36 = dma.done [#allocation4], 3072
    $region13: #{tpu_custom_call.1} parent=1 // pred_fallthru
      _
    // Predicated region
    $region14: #{tpu_custom_call.1} parent=1 // pred_check
      _
    $region15: #{tpu_custom_call.1} parent=1 // pred_check_branch
      %38 = sbr.rel (0) target = $region17
    $region16: #{tpu_custom_call.1} parent=1 // pred_region
      %39 = dma.done [#allocation7], 9216
    $region17: #{tpu_custom_call.1} parent=1 // pred_fallthru
      _
    %41 = vst [vmem:[#allocation2] sm:$0xff] 0.0
    %vm42 = vcmask 130048
    %43 = vst.msk [vmem:[#allocation2 + $0x8] sm:$0xff] %vm42, 0.0
    %44 = vst [vmem:[#allocation2 + $0x10] sm:$0xf] 0.0
    %vm45 = vcmask 125952
    %46 = vst.msk [vmem:[#allocation2 + $0x18] sm:$0xf] %vm45, 0.0
    %47 = vst [vmem:[#allocation2 + $0x20] sm:$0xff] 0.0
    %48 = vst.msk [vmem:[#allocation2 + $0x28] sm:$0xff] %vm42, 0.0
    %49 = vst [vmem:[#allocation2 + $0x30] sm:$0xf] 0.0
    %50 = vst.msk [vmem:[#allocation2 + $0x38] sm:$0xf] %vm45, 0.0
    %51 = vst [vmem:[#allocation2 + $0x40] sm:$0xff] 0.0
    %52 = vst.msk [vmem:[#allocation2 + $0x48] sm:$0xff] %vm42, 0.0
    %53 = vst [vmem:[#allocation2 + $0x50] sm:$0xf] 0.0
    %54 = vst.msk [vmem:[#allocation2 + $0x58] sm:$0xf] %vm45, 0.0
    %55 = vst [vmem:[#allocation2 + $0x60] sm:$0xff] 0.0
    %56 = vst.msk [vmem:[#allocation2 + $0x68] sm:$0xff] %vm42, 0.0
    %57 = vst [vmem:[#allocation2 + $0x70] sm:$0xf] 0.0
    %58 = vst.msk [vmem:[#allocation2 + $0x78] sm:$0xf] %vm45, 0.0
    %59 = vst [vmem:[#allocation2 + $0x80] sm:$0xff] 0.0
    %60 = vst.msk [vmem:[#allocation2 + $0x88] sm:$0xff] %vm42, 0.0
    %61 = vst [vmem:[#allocation2 + $0x90] sm:$0xf] 0.0
    %62 = vst.msk [vmem:[#allocation2 + $0x98] sm:$0xf] %vm45, 0.0
    %63 = vst [vmem:[#allocation2 + $0xa0] sm:$0xff] 0.0
    %64 = vst.msk [vmem:[#allocation2 + $0xa8] sm:$0xff] %vm42, 0.0
    %65 = vst [vmem:[#allocation2 + $0xb0] sm:$0xf] 0.0
    %66 = vst.msk [vmem:[#allocation2 + $0xb8] sm:$0xf] %vm45, 0.0
    %67 = vst [vmem:[#allocation2 + $0xc0] sm:$0xff] 0.0
    %68 = vst.msk [vmem:[#allocation2 + $0xc8] sm:$0xff] %vm42, 0.0
    %69 = vst [vmem:[#allocation2 + $0xd0] sm:$0xf] 0.0
    %70 = vst.msk [vmem:[#allocation2 + $0xd8] sm:$0xf] %vm45, 0.0
    %71 = vst [vmem:[#allocation2 + $0xe0] sm:$0xff] 0.0
    %72 = vst.msk [vmem:[#allocation2 + $0xe8] sm:$0xff] %vm42, 0.0
    %73 = vst [vmem:[#allocation2 + $0xf0] sm:$0xf] 0.0
    %74 = vst.msk [vmem:[#allocation2 + $0xf8] sm:$0xf] %vm45, 0.0
    %75 = vst [vmem:[#allocation2 + $0x100] sm:$0xff] 0.0
    %76 = vst.msk [vmem:[#allocation2 + $0x108] sm:$0xff] %vm42, 0.0
    %77 = vst [vmem:[#allocation2 + $0x110] sm:$0xf] 0.0
    %78 = vst.msk [vmem:[#allocation2 + $0x118] sm:$0xf] %vm45, 0.0
    %79 = vst [vmem:[#allocation2 + $0x120] sm:$0xff] 0.0
    %80 = vst.msk [vmem:[#allocation2 + $0x128] sm:$0xff] %vm42, 0.0
    %81 = vst [vmem:[#allocation2 + $0x130] sm:$0xf] 0.0
    %82 = vst.msk [vmem:[#allocation2 + $0x138] sm:$0xf] %vm45, 0.0
    %v83 = vld [vmem:[#allocation3] sm:$0xff]
    %v84 = vld [vmem:[#allocation3 + $0x8] sm:$0x33]
    %v85 = vld [vmem:[#allocation3 + $0x10] sm:$0xff]
    %v86 = vld [vmem:[#allocation3 + $0x18] sm:$0x33]
    %v87 = vld [vmem:[#allocation3 + $0x20] sm:$0xff]
    %v88 = vld [vmem:[#allocation3 + $0x28] sm:$0x33]
    %v89 = vld [vmem:[#allocation3 + $0x30] sm:$0xff]
    %v90 = vld [vmem:[#allocation3 + $0x38] sm:$0x33]
    %v91 = vld [vmem:[#allocation3 + $0x40] sm:$0xff]
    %v92 = vld [vmem:[#allocation3 + $0x48] sm:$0x33]
    %v93 = vld [vmem:[#allocation3 + $0x50] sm:$0xff]
    %v94 = vld [vmem:[#allocation3 + $0x58] sm:$0x33]
    %v95 = vld [vmem:[#allocation3 + $0x60] sm:$0xff]
    %v96 = vld [vmem:[#allocation3 + $0x68] sm:$0x33]
    %v97 = vld [vmem:[#allocation3 + $0x70] sm:$0xff]
    %v98 = vld [vmem:[#allocation3 + $0x78] sm:$0x33]
    %v99 = vld [vmem:[#allocation3 + $0x80] sm:$0xff]
    %v100 = vld [vmem:[#allocation3 + $0x88] sm:$0x33]
    %v101 = vld [vmem:[#allocation3 + $0x90] sm:$0xff]
    %v102 = vld [vmem:[#allocation3 + $0x98] sm:$0x33]
    %v124 = vunpack.c.l.s4 1983009808
    %v125 = vunpack.c.0.s8 %v124
    %v126 = vlaneseq
    %v127 = vshrl.u32 %v126, 7
    %v128 = vsub.s32 %v125, %v127
    %v129 = vrot.slane %v83, %v128
    %v130 = vcombine.high %v129, %v129
    %v132 = vunpack.c.l.s4 1983009808
    %v133 = vunpack.c.0.s8 %v132
    %v134 = vlaneseq
    %v135 = vshrl.u32 %v134, 7
    %v136 = vsub.s32 %v133, %v135
    %v137 = vrot.slane %v84, %v136
    %v139 = vunpack.c.l.s4 1983009808
    %v140 = vunpack.c.0.s8 %v139
    %v141 = vlaneseq
    %v142 = vshrl.u32 %v141, 7
    %v143 = vsub.s32 %v140, %v142
    %v144 = vrot.slane %v85, %v143
    %v145 = vcombine.high %v144, %v144
    %v147 = vunpack.c.l.s4 1983009808
    %v148 = vunpack.c.0.s8 %v147
    %v149 = vlaneseq
    %v150 = vshrl.u32 %v149, 7
    %v151 = vsub.s32 %v148, %v150
    %v152 = vrot.slane %v86, %v151
    %v154 = vunpack.c.l.s4 1983009808
    %v155 = vunpack.c.0.s8 %v154
    %v156 = vlaneseq
    %v157 = vshrl.u32 %v156, 7
    %v158 = vsub.s32 %v155, %v157
    %v159 = vrot.slane %v87, %v158
    %v160 = vcombine.high %v159, %v159
    %v162 = vunpack.c.l.s4 1983009808
    %v163 = vunpack.c.0.s8 %v162
    %v164 = vlaneseq
    %v165 = vshrl.u32 %v164, 7
    %v166 = vsub.s32 %v163, %v165
    %v167 = vrot.slane %v88, %v166
    %v169 = vunpack.c.l.s4 1983009808
    %v170 = vunpack.c.0.s8 %v169
    %v171 = vlaneseq
    %v172 = vshrl.u32 %v171, 7
    %v173 = vsub.s32 %v170, %v172
    %v174 = vrot.slane %v89, %v173
    %v175 = vcombine.high %v174, %v174
    %v177 = vunpack.c.l.s4 1983009808
    %v178 = vunpack.c.0.s8 %v177
    %v179 = vlaneseq
    %v180 = vshrl.u32 %v179, 7
    %v181 = vsub.s32 %v178, %v180
    %v182 = vrot.slane %v90, %v181
    %v184 = vunpack.c.l.s4 1983009808
    %v185 = vunpack.c.0.s8 %v184
    %v186 = vlaneseq
    %v187 = vshrl.u32 %v186, 7
    %v188 = vsub.s32 %v185, %v187
    %v189 = vrot.slane %v91, %v188
    %v190 = vcombine.high %v189, %v189
    %v192 = vunpack.c.l.s4 1983009808
    %v193 = vunpack.c.0.s8 %v192
    %v194 = vlaneseq
    %v195 = vshrl.u32 %v194, 7
    %v196 = vsub.s32 %v193, %v195
    %v197 = vrot.slane %v92, %v196
    %v199 = vunpack.c.l.s4 1983009808
    %v200 = vunpack.c.0.s8 %v199
    %v201 = vlaneseq
    %v202 = vshrl.u32 %v201, 7
    %v203 = vsub.s32 %v200, %v202
    %v204 = vrot.slane %v93, %v203
    %v205 = vcombine.high %v204, %v204
    %v207 = vunpack.c.l.s4 1983009808
    %v208 = vunpack.c.0.s8 %v207
    %v209 = vlaneseq
    %v210 = vshrl.u32 %v209, 7
    %v211 = vsub.s32 %v208, %v210
    %v212 = vrot.slane %v94, %v211
    %v214 = vunpack.c.l.s4 1983009808
    %v215 = vunpack.c.0.s8 %v214
    %v216 = vlaneseq
    %v217 = vshrl.u32 %v216, 7
    %v218 = vsub.s32 %v215, %v217
    %v219 = vrot.slane %v95, %v218
    %v220 = vcombine.high %v219, %v219
    %v222 = vunpack.c.l.s4 1983009808
    %v223 = vunpack.c.0.s8 %v222
    %v224 = vlaneseq
    %v225 = vshrl.u32 %v224, 7
    %v226 = vsub.s32 %v223, %v225
    %v227 = vrot.slane %v96, %v226
    %v229 = vunpack.c.l.s4 1983009808
    %v230 = vunpack.c.0.s8 %v229
    %v231 = vlaneseq
    %v232 = vshrl.u32 %v231, 7
    %v233 = vsub.s32 %v230, %v232
    %v234 = vrot.slane %v97, %v233
    %v235 = vcombine.high %v234, %v234
    %v237 = vunpack.c.l.s4 1983009808
    %v238 = vunpack.c.0.s8 %v237
    %v239 = vlaneseq
    %v240 = vshrl.u32 %v239, 7
    %v241 = vsub.s32 %v238, %v240
    %v242 = vrot.slane %v98, %v241
    %v244 = vunpack.c.l.s4 1983009808
    %v245 = vunpack.c.0.s8 %v244
    %v246 = vlaneseq
    %v247 = vshrl.u32 %v246, 7
    %v248 = vsub.s32 %v245, %v247
    %v249 = vrot.slane %v99, %v248
    %v250 = vcombine.high %v249, %v249
    %v252 = vunpack.c.l.s4 1983009808
    %v253 = vunpack.c.0.s8 %v252
    %v254 = vlaneseq
    %v255 = vshrl.u32 %v254, 7
    %v256 = vsub.s32 %v253, %v255
    %v257 = vrot.slane %v100, %v256
    %v259 = vunpack.c.l.s4 1983009808
    %v260 = vunpack.c.0.s8 %v259
    %v261 = vlaneseq
    %v262 = vshrl.u32 %v261, 7
    %v263 = vsub.s32 %v260, %v262
    %v264 = vrot.slane %v101, %v263
    %v265 = vcombine.high %v264, %v264
    %v267 = vunpack.c.l.s4 1983009808
    %v268 = vunpack.c.0.s8 %v267
    %v269 = vlaneseq
    %v270 = vshrl.u32 %v269, 7
    %v271 = vsub.s32 %v268, %v270
    %v272 = vrot.slane %v102, %v271
    %v273 = vld [vmem:[#allocation6] sm:$0xff]
    %v274 = vld [vmem:[#allocation6 + $0x8] sm:$0xff]
    %v275 = vld [vmem:[#allocation6 + $0x10] sm:$0xff]
    %v276 = vld [vmem:[#allocation6 + $0x18] sm:$0xff]
    %v277 = vld [vmem:[#allocation6 + $0x20] sm:$0xff]
    %v278 = vld [vmem:[#allocation6 + $0x28] sm:$0xff]
    %v279 = vld [vmem:[#allocation6 + $0x30] sm:$0xff]
    %v280 = vld [vmem:[#allocation6 + $0x38] sm:$0xff]
    %v281 = vld [vmem:[#allocation6 + $0x40] sm:$0xff]
    %v282 = vld [vmem:[#allocation6 + $0x48] sm:$0xff]
    %v283 = vld [vmem:[#allocation6 + $0x50] sm:$0xff]
    %v284 = vld [vmem:[#allocation6 + $0x58] sm:$0xff]
    %v285 = vld [vmem:[#allocation6 + $0x60] sm:$0xff]
    %v286 = vld [vmem:[#allocation6 + $0x68] sm:$0xff]
    %v287 = vld [vmem:[#allocation6 + $0x70] sm:$0xff]
    %v288 = vld [vmem:[#allocation6 + $0x78] sm:$0xff]
    %v289 = vld [vmem:[#allocation6 + $0x80] sm:$0xff]
    %v290 = vld [vmem:[#allocation6 + $0x88] sm:$0xff]
    %v291 = vld [vmem:[#allocation6 + $0x90] sm:$0xff]
    %v292 = vld [vmem:[#allocation6 + $0x98] sm:$0xff]
    %v293 = vld [vmem:[#allocation6 + $0xa0] sm:$0xff]
    %v294 = vld [vmem:[#allocation6 + $0xa8] sm:$0xff]
    %v295 = vld [vmem:[#allocation6 + $0xb0] sm:$0xff]
    %v296 = vld [vmem:[#allocation6 + $0xb8] sm:$0xff]
    %v297 = vcombine.low %v129, %v130
    %v298 = vcombine.low %v137, %v144
    %v300 = vunpack.c.l.s4 1983009808
    %v301 = vunpack.c.0.s8 %v300
    %v302 = vlaneseq
    %v303 = vshrl.u32 %v302, 7
    %v304 = vsub.s32 %v301, %v303
    %v305 = vrot.slane %v297, %v304
    %v307 = vunpack.c.l.s4 1983009808
    %v308 = vunpack.c.0.s8 %v307
    %v309 = vlaneseq
    %v310 = vshrl.u32 %v309, 7
    %v311 = vsub.s32 %v308, %v310
    %v312 = vrot.slane %v298, %v311
    %v313 = vcombine.low %v305, %v312
    %v314 = vcombine.high %v305, %v312
    %v315 = vcombine.low %v145, %v152
    %v316 = vcombine.low %v159, %v160
    %v318 = vunpack.c.l.s4 1983009808
    %v319 = vunpack.c.0.s8 %v318
    %v320 = vlaneseq
    %v321 = vshrl.u32 %v320, 7
    %v322 = vsub.s32 %v319, %v321
    %v323 = vrot.slane %v315, %v322
    %v325 = vunpack.c.l.s4 1983009808
    %v326 = vunpack.c.0.s8 %v325
    %v327 = vlaneseq
    %v328 = vshrl.u32 %v327, 7
    %v329 = vsub.s32 %v326, %v328
    %v330 = vrot.slane %v316, %v329
    %v331 = vcombine.low %v323, %v330
    %v332 = vcombine.high %v323, %v330
    %v333 = vcombine.low %v167, %v174
    %v334 = vcombine.low %v175, %v182
    %v336 = vunpack.c.l.s4 1983009808
    %v337 = vunpack.c.0.s8 %v336
    %v338 = vlaneseq
    %v339 = vshrl.u32 %v338, 7
    %v340 = vsub.s32 %v337, %v339
    %v341 = vrot.slane %v333, %v340
    %v343 = vunpack.c.l.s4 1983009808
    %v344 = vunpack.c.0.s8 %v343
    %v345 = vlaneseq
    %v346 = vshrl.u32 %v345, 7
    %v347 = vsub.s32 %v344, %v346
    %v348 = vrot.slane %v334, %v347
    %v349 = vcombine.low %v341, %v348
    %v350 = vcombine.high %v341, %v348
    %v351 = vcombine.low %v189, %v190
    %v352 = vcombine.low %v197, %v204
    %v354 = vunpack.c.l.s4 1983009808
    %v355 = vunpack.c.0.s8 %v354
    %v356 = vlaneseq
    %v357 = vshrl.u32 %v356, 7
    %v358 = vsub.s32 %v355, %v357
    %v359 = vrot.slane %v351, %v358
    %v361 = vunpack.c.l.s4 1983009808
    %v362 = vunpack.c.0.s8 %v361
    %v363 = vlaneseq
    %v364 = vshrl.u32 %v363, 7
    %v365 = vsub.s32 %v362, %v364
    %v366 = vrot.slane %v352, %v365
    %v367 = vcombine.low %v359, %v366
    %v368 = vcombine.high %v359, %v366
    %v369 = vcombine.low %v205, %v212
    %v370 = vcombine.low %v219, %v220
    %v372 = vunpack.c.l.s4 1983009808
    %v373 = vunpack.c.0.s8 %v372
    %v374 = vlaneseq
    %v375 = vshrl.u32 %v374, 7
    %v376 = vsub.s32 %v373, %v375
    %v377 = vrot.slane %v369, %v376
    %v379 = vunpack.c.l.s4 1983009808
    %v380 = vunpack.c.0.s8 %v379
    %v381 = vlaneseq
    %v382 = vshrl.u32 %v381, 7
    %v383 = vsub.s32 %v380, %v382
    %v384 = vrot.slane %v370, %v383
    %v385 = vcombine.low %v377, %v384
    %v386 = vcombine.high %v377, %v384
    %v387 = vcombine.low %v227, %v234
    %v388 = vcombine.low %v235, %v242
    %v390 = vunpack.c.l.s4 1983009808
    %v391 = vunpack.c.0.s8 %v390
    %v392 = vlaneseq
    %v393 = vshrl.u32 %v392, 7
    %v394 = vsub.s32 %v391, %v393
    %v395 = vrot.slane %v387, %v394
    %v397 = vunpack.c.l.s4 1983009808
    %v398 = vunpack.c.0.s8 %v397
    %v399 = vlaneseq
    %v400 = vshrl.u32 %v399, 7
    %v401 = vsub.s32 %v398, %v400
    %v402 = vrot.slane %v388, %v401
    %v403 = vcombine.low %v395, %v402
    %v404 = vcombine.high %v395, %v402
    %v405 = vcombine.low %v249, %v250
    %v406 = vcombine.low %v257, %v264
    %v408 = vunpack.c.l.s4 1983009808
    %v409 = vunpack.c.0.s8 %v408
    %v410 = vlaneseq
    %v411 = vshrl.u32 %v410, 7
    %v412 = vsub.s32 %v409, %v411
    %v413 = vrot.slane %v405, %v412
    %v415 = vunpack.c.l.s4 1983009808
    %v416 = vunpack.c.0.s8 %v415
    %v417 = vlaneseq
    %v418 = vshrl.u32 %v417, 7
    %v419 = vsub.s32 %v416, %v418
    %v420 = vrot.slane %v406, %v419
    %v421 = vcombine.low %v413, %v420
    %v422 = vcombine.high %v413, %v420
    %v423 = vcombine.low %v265, %v272
    %v425 = vunpack.c.l.s4 1983009808
    %v426 = vunpack.c.0.s8 %v425
    %v427 = vlaneseq
    %v428 = vshrl.u32 %v427, 7
    %v429 = vsub.s32 %v426, %v428
    %v430 = vrot.slane %v423, %v429
    %v431 = vcombine.high %v430, %v430
    %v464 = vunpack.c.l.b16 %v273
    %v465 = vunpack.c.h.b16 %v273
    %v466 = vunpack.c.l.b16 %v274
    %v467 = vunpack.c.h.b16 %v274
    %v468 = vunpack.c.l.b16 %v275
    %v469 = vunpack.c.h.b16 %v275
    %v470 = vunpack.c.l.b16 %v276
    %v471 = vunpack.c.h.b16 %v276
    %v472 = vunpack.c.l.b16 %v277
    %v473 = vunpack.c.h.b16 %v277
    %v474 = vunpack.c.l.b16 %v278
    %v475 = vunpack.c.h.b16 %v278
    %v476 = vunpack.c.l.b16 %v279
    %v477 = vunpack.c.h.b16 %v279
    %v478 = vunpack.c.l.b16 %v280
    %v479 = vunpack.c.h.b16 %v280
    %v480 = vunpack.c.l.b16 %v281
    %v481 = vunpack.c.h.b16 %v281
    %v482 = vunpack.c.l.b16 %v282
    %v483 = vunpack.c.h.b16 %v282
    %v484 = vunpack.c.l.b16 %v283
    %v485 = vunpack.c.h.b16 %v283
    %v486 = vunpack.c.l.b16 %v284
    %v487 = vunpack.c.h.b16 %v284
    %v488 = vunpack.c.l.b16 %v285
    %v489 = vunpack.c.h.b16 %v285
    %v490 = vunpack.c.l.b16 %v286
    %v491 = vunpack.c.h.b16 %v286
    %v492 = vunpack.c.l.b16 %v287
    %v493 = vunpack.c.h.b16 %v287
    %v494 = vunpack.c.l.b16 %v288
    %v495 = vunpack.c.h.b16 %v288
    %v496 = vunpack.c.l.b16 %v289
    %v497 = vunpack.c.h.b16 %v289
    %v498 = vunpack.c.l.b16 %v290
    %v499 = vunpack.c.h.b16 %v290
    %v500 = vunpack.c.l.b16 %v291
    %v501 = vunpack.c.h.b16 %v291
    %v502 = vunpack.c.l.b16 %v292
    %v503 = vunpack.c.h.b16 %v292
    %v504 = vunpack.c.l.b16 %v293
    %v505 = vunpack.c.h.b16 %v293
    %v506 = vunpack.c.l.b16 %v294
    %v507 = vunpack.c.h.b16 %v294
    %v508 = vunpack.c.l.b16 %v295
    %v509 = vunpack.c.h.b16 %v295
    %v510 = vunpack.c.l.b16 %v296
    %v511 = vunpack.c.h.b16 %v296
    %v512 = vpack.c.b16 %v466, %v464
    %v513 = vpack.c.b16 %v467, %v465
    %v514 = vpack.c.b16 %v470, %v468
    %v515 = vpack.c.b16 %v471, %v469
    %v516 = vpack.c.b16 %v474, %v472
    %v517 = vpack.c.b16 %v475, %v473
    %v518 = vpack.c.b16 %v478, %v476
    %v519 = vpack.c.b16 %v479, %v477
    %v520 = vpack.c.b16 %v482, %v480
    %v521 = vpack.c.b16 %v483, %v481
    %v522 = vpack.c.b16 %v486, %v484
    %v523 = vpack.c.b16 %v487, %v485
    %v524 = vpack.c.b16 %v490, %v488
    %v525 = vpack.c.b16 %v491, %v489
    %v526 = vpack.c.b16 %v494, %v492
    %v527 = vpack.c.b16 %v495, %v493
    %v528 = vpack.c.b16 %v498, %v496
    %v529 = vpack.c.b16 %v499, %v497
    %v530 = vpack.c.b16 %v502, %v500
    %v531 = vpack.c.b16 %v503, %v501
    %v532 = vpack.c.b16 %v506, %v504
    %v533 = vpack.c.b16 %v507, %v505
    %v534 = vpack.c.b16 %v510, %v508
    %v535 = vpack.c.b16 %v511, %v509
    %vm560 = vcmask 523264
    %v562 = vsel %vm560, %v314, 0
    %v565 = vsel %vm560, %v332, 0
    %v568 = vsel %vm560, %v350, 0
    %v571 = vsel %vm560, %v368, 0
    %v574 = vsel %vm560, %v386, 0
    %v577 = vsel %vm560, %v404, 0
    %v580 = vsel %vm560, %v422, 0
    %v583 = vsel %vm560, %v431, 0
    %585 = vmatprep.subr.bf16.mxu0 %v513
    %586 = vmatpush1.bf16.msra.mxu0 %v512
    %587 = vmatprep.subr.bf16.mxu0 %v515
    %588 = vmatpush1.bf16.msra.mxu0 %v514
    %589 = vmatprep.subr.bf16.mxu0 %v517
    %590 = vmatpush1.bf16.msra.mxu0 %v516
    %591 = vmatprep.subr.bf16.mxu0 %v519
    %592 = vmatpush1.bf16.msra.mxu0 %v518
    %593 = vmatprep.subr.bf16.mxu0 %v521
    %594 = vmatpush1.bf16.msra.mxu0 %v520
    %595 = vmatprep.subr.bf16.mxu0 %v523
    %596 = vmatpush1.bf16.msra.mxu0 %v522
    %597 = vmatprep.subr.bf16.mxu0 %v525
    %598 = vmatpush1.bf16.msra.mxu0 %v524
    %599 = vmatprep.subr.bf16.mxu0 %v527
    %600 = vmatpush1.bf16.msra.mxu0 %v526
    %601 = vmatprep.subr.bf16.mxu0 %v529
    %602 = vmatpush1.bf16.msra.mxu0 %v528
    %603 = vmatprep.subr.bf16.mxu0 %v531
    %604 = vmatpush1.bf16.msra.mxu0 %v530
    %605 = vmatprep.subr.bf16.mxu0 %v533
    %606 = vmatpush1.bf16.msra.mxu0 %v532
    %607 = vmatprep.subr.bf16.mxu0 %v535
    %608 = vmatpush1.bf16.msra.mxu0 %v534
    %609 = vmatprep.subr.bf16.mxu0 0
    %610 = vmatpush1.bf16.msra.mxu0 0
    %611 = vmatprep.subr.bf16.mxu0 0
    %612 = vmatpush1.bf16.msra.mxu0 0
    %613 = vmatprep.subr.bf16.mxu0 0
    %614 = vmatpush1.bf16.msra.mxu0 0
    %615 = vmatprep.subr.bf16.mxu0 0
    %616 = vmatpush1.bf16.msra.mxu0 0
    %617 = vmatprep.mubr.bf16.mxu0 %v562
    %618 = vmatmul.mubr.bf16.gmra.mrb[0].mxu0 %v313
    %v619 = vpop.f32.mrb[0].mxu0
    %v620 = vadd.f32 0.0, %v619
    %v621 = vpop.f32.mrb[0].mxu0
    %v622 = vadd.f32 0.0, %v621
    %v623 = vpop.f32.mrb[0].mxu0
    %v624 = vadd.f32 0.0, %v623
    %v625 = vpop.f32.mrb[0].mxu0
    %v626 = vadd.f32 0.0, %v625
    %627 = vmatprep.mubr.bf16.mxu0 %v565
    %628 = vmatmul.mubr.bf16.gmra.mrb[0].mxu0 %v331
    %v629 = vpop.f32.mrb[0].mxu0
    %v630 = vadd.f32 0.0, %v629
    %v631 = vpop.f32.mrb[0].mxu0
    %v632 = vadd.f32 0.0, %v631
    %v633 = vpop.f32.mrb[0].mxu0
    %v634 = vadd.f32 0.0, %v633
    %v635 = vpop.f32.mrb[0].mxu0
    %v636 = vadd.f32 0.0, %v635
    %637 = vmatprep.mubr.bf16.mxu0 %v568
    %638 = vmatmul.mubr.bf16.gmra.mrb[0].mxu0 %v349
    %v639 = vpop.f32.mrb[0].mxu0
    %v640 = vadd.f32 0.0, %v639
    %v641 = vpop.f32.mrb[0].mxu0
    %v642 = vadd.f32 0.0, %v641
    %v643 = vpop.f32.mrb[0].mxu0
    %v644 = vadd.f32 0.0, %v643
    %v645 = vpop.f32.mrb[0].mxu0
    %v646 = vadd.f32 0.0, %v645
    %647 = vmatprep.mubr.bf16.mxu0 %v571
    %648 = vmatmul.mubr.bf16.gmra.mrb[0].mxu0 %v367
    %v649 = vpop.f32.mrb[0].mxu0
    %v650 = vadd.f32 0.0, %v649
    %v651 = vpop.f32.mrb[0].mxu0
    %v652 = vadd.f32 0.0, %v651
    %v653 = vpop.f32.mrb[0].mxu0
    %v654 = vadd.f32 0.0, %v653
    %v655 = vpop.f32.mrb[0].mxu0
    %v656 = vadd.f32 0.0, %v655
    %657 = vmatprep.mubr.bf16.mxu0 %v574
    %658 = vmatmul.mubr.bf16.gmra.mrb[0].mxu0 %v385
    %v659 = vpop.f32.mrb[0].mxu0
    %v660 = vadd.f32 0.0, %v659
    %v661 = vpop.f32.mrb[0].mxu0
    %v662 = vadd.f32 0.0, %v661
    %v663 = vpop.f32.mrb[0].mxu0
    %v664 = vadd.f32 0.0, %v663
    %v665 = vpop.f32.mrb[0].mxu0
    %v666 = vadd.f32 0.0, %v665
    %667 = vmatprep.mubr.bf16.mxu0 %v577
    %668 = vmatmul.mubr.bf16.gmra.mrb[0].mxu0 %v403
    %v669 = vpop.f32.mrb[0].mxu0
    %v670 = vadd.f32 0.0, %v669
    %v671 = vpop.f32.mrb[0].mxu0
    %v672 = vadd.f32 0.0, %v671
    %v673 = vpop.f32.mrb[0].mxu0
    %v674 = vadd.f32 0.0, %v673
    %v675 = vpop.f32.mrb[0].mxu0
    %v676 = vadd.f32 0.0, %v675
    %677 = vmatprep.mubr.bf16.mxu0 %v580
    %678 = vmatmul.mubr.bf16.gmra.mrb[0].mxu0 %v421
    %v679 = vpop.f32.mrb[0].mxu0
    %v680 = vadd.f32 0.0, %v679
    %v681 = vpop.f32.mrb[0].mxu0
    %v682 = vadd.f32 0.0, %v681
    %v683 = vpop.f32.mrb[0].mxu0
    %v684 = vadd.f32 0.0, %v683
    %v685 = vpop.f32.mrb[0].mxu0
    %v686 = vadd.f32 0.0, %v685
    %687 = vmatprep.mubr.bf16.mxu0 %v583
    %688 = vmatmul.mubr.bf16.gmra.mrb[0].mxu0 %v430
    %v689 = vpop.f32.mrb[0].mxu0
    %v690 = vadd.f32 0.0, %v689
    %v691 = vpop.f32.mrb[0].mxu0
    %v692 = vadd.f32 0.0, %v691
    %v693 = vpop.f32.mrb[0].mxu0
    %v694 = vpop.f32.mrb[0].mxu0
    %695 = vdwg.mxu0
    %v696 = vld [vmem:[#allocation2] sm:$0xff]
    %v697 = vld [vmem:[#allocation2 + $0x8] sm:$0xff]
    %v698 = vld [vmem:[#allocation2 + $0x10] sm:$0xf]
    %v699 = vld [vmem:[#allocation2 + $0x18] sm:$0xf]
    %v700 = vld [vmem:[#allocation2 + $0x20] sm:$0xff]
    %v701 = vld [vmem:[#allocation2 + $0x28] sm:$0xff]
    %v702 = vld [vmem:[#allocation2 + $0x30] sm:$0xf]
    %v703 = vld [vmem:[#allocation2 + $0x38] sm:$0xf]
    %v704 = vld [vmem:[#allocation2 + $0x40] sm:$0xff]
    %v705 = vld [vmem:[#allocation2 + $0x48] sm:$0xff]
    %v706 = vld [vmem:[#allocation2 + $0x50] sm:$0xf]
    %v707 = vld [vmem:[#allocation2 + $0x58] sm:$0xf]
    %v708 = vld [vmem:[#allocation2 + $0x60] sm:$0xff]
    %v709 = vld [vmem:[#allocation2 + $0x68] sm:$0xff]
    %v710 = vld [vmem:[#allocation2 + $0x70] sm:$0xf]
    %v711 = vld [vmem:[#allocation2 + $0x78] sm:$0xf]
    %v712 = vld [vmem:[#allocation2 + $0x80] sm:$0xff]
    %v713 = vld [vmem:[#allocation2 + $0x88] sm:$0xff]
    %v714 = vld [vmem:[#allocation2 + $0x90] sm:$0xf]
    %v715 = vld [vmem:[#allocation2 + $0x98] sm:$0xf]
    %v716 = vld [vmem:[#allocation2 + $0xa0] sm:$0xff]
    %v717 = vld [vmem:[#allocation2 + $0xa8] sm:$0xff]
    %v718 = vld [vmem:[#allocation2 + $0xb0] sm:$0xf]
    %v719 = vld [vmem:[#allocation2 + $0xb8] sm:$0xf]
    %v720 = vld [vmem:[#allocation2 + $0xc0] sm:$0xff]
    %v721 = vld [vmem:[#allocation2 + $0xc8] sm:$0xff]
    %v722 = vld [vmem:[#allocation2 + $0xd0] sm:$0xf]
    %v723 = vld [vmem:[#allocation2 + $0xd8] sm:$0xf]
    %v724 = vld [vmem:[#allocation2 + $0xe0] sm:$0xff]
    %v725 = vld [vmem:[#allocation2 + $0xe8] sm:$0xff]
    %v726 = vld [vmem:[#allocation2 + $0xf0] sm:$0xf]
    %v727 = vld [vmem:[#allocation2 + $0xf8] sm:$0xf]
    %v728 = vld [vmem:[#allocation2 + $0x100] sm:$0xff]
    %v729 = vld [vmem:[#allocation2 + $0x108] sm:$0xff]
    %v730 = vld [vmem:[#allocation2 + $0x110] sm:$0xf]
    %v731 = vld [vmem:[#allocation2 + $0x118] sm:$0xf]
    %v732 = vld [vmem:[#allocation2 + $0x120] sm:$0xff]
    %v733 = vld [vmem:[#allocation2 + $0x128] sm:$0xff]
    %v734 = vld [vmem:[#allocation2 + $0x130] sm:$0xf]
    %v735 = vld [vmem:[#allocation2 + $0x138] sm:$0xf]
    %v766 = vcombine.low %v620, %v622
    %v767 = vcombine.high %v620, %v622
    %v768 = vcombine.low %v624, %v626
    %v769 = vcombine.high %v624, %v626
    %v770 = vcombine.low %v630, %v632
    %v771 = vcombine.high %v630, %v632
    %v772 = vcombine.low %v634, %v636
    %v773 = vcombine.high %v634, %v636
    %v774 = vcombine.low %v640, %v642
    %v775 = vcombine.high %v640, %v642
    %v776 = vcombine.low %v644, %v646
    %v777 = vcombine.high %v644, %v646
    %v778 = vcombine.low %v650, %v652
    %v779 = vcombine.high %v650, %v652
    %v780 = vcombine.low %v654, %v656
    %v781 = vcombine.high %v654, %v656
    %v782 = vcombine.low %v660, %v662
    %v783 = vcombine.high %v660, %v662
    %v784 = vcombine.low %v664, %v666
    %v785 = vcombine.high %v664, %v666
    %v786 = vcombine.low %v670, %v672
    %v787 = vcombine.high %v670, %v672
    %v788 = vcombine.low %v674, %v676
    %v789 = vcombine.high %v674, %v676
    %v790 = vcombine.low %v680, %v682
    %v791 = vcombine.high %v680, %v682
    %v792 = vcombine.low %v684, %v686
    %v793 = vcombine.high %v684, %v686
    %v794 = vcombine.low %v690, %v692
    %v795 = vcombine.high %v690, %v692
    %v806 = vcombine.low %v766, %v767
    %v807 = vcombine.high %v766, %v767
    %v808 = vcombine.high %v768, %v768
    %v809 = vcombine.low %v769, %v770
    %v810 = vcombine.high %v769, %v770
    %v811 = vcombine.high %v771, %v771
    %v812 = vcombine.low %v772, %v773
    %v813 = vcombine.high %v772, %v773
    %v814 = vcombine.high %v774, %v774
    %v815 = vcombine.low %v775, %v776
    %v816 = vcombine.high %v775, %v776
    %v817 = vcombine.high %v777, %v777
    %v818 = vcombine.low %v778, %v779
    %v819 = vcombine.high %v778, %v779
    %v820 = vcombine.high %v780, %v780
    %v821 = vcombine.low %v781, %v782
    %v822 = vcombine.high %v781, %v782
    %v823 = vcombine.high %v783, %v783
    %v824 = vcombine.low %v784, %v785
    %v825 = vcombine.high %v784, %v785
    %v826 = vcombine.high %v786, %v786
    %v827 = vcombine.low %v787, %v788
    %v828 = vcombine.high %v787, %v788
    %v829 = vcombine.high %v789, %v789
    %v830 = vcombine.low %v790, %v791
    %v831 = vcombine.high %v790, %v791
    %v832 = vcombine.high %v792, %v792
    %v833 = vcombine.low %v793, %v794
    %v834 = vcombine.high %v793, %v794
    %v835 = vcombine.high %v795, %v795
    %v866 = vadd.f32 %v696, %v806
    %v867 = vadd.f32 %v697, %v807
    %v868 = vadd.f32 %v698, %v768
    %v869 = vadd.f32 %v699, %v808
    %v870 = vadd.f32 %v700, %v809
    %v871 = vadd.f32 %v701, %v810
    %v872 = vadd.f32 %v702, %v771
    %v873 = vadd.f32 %v703, %v811
    %v874 = vadd.f32 %v704, %v812
    %v875 = vadd.f32 %v705, %v813
    %v876 = vadd.f32 %v706, %v774
    %v877 = vadd.f32 %v707, %v814
    %v878 = vadd.f32 %v708, %v815
    %v879 = vadd.f32 %v709, %v816
    %v880 = vadd.f32 %v710, %v777
    %v881 = vadd.f32 %v711, %v817
    %v882 = vadd.f32 %v712, %v818
    %v883 = vadd.f32 %v713, %v819
    %v884 = vadd.f32 %v714, %v780
    %v885 = vadd.f32 %v715, %v820
    %v886 = vadd.f32 %v716, %v821
    %v887 = vadd.f32 %v717, %v822
    %v888 = vadd.f32 %v718, %v783
    %v889 = vadd.f32 %v719, %v823
    %v890 = vadd.f32 %v720, %v824
    %v891 = vadd.f32 %v721, %v825
    %v892 = vadd.f32 %v722, %v786
    %v893 = vadd.f32 %v723, %v826
    %v894 = vadd.f32 %v724, %v827
    %v895 = vadd.f32 %v725, %v828
    %v896 = vadd.f32 %v726, %v789
    %v897 = vadd.f32 %v727, %v829
    %v898 = vadd.f32 %v728, %v830
    %v899 = vadd.f32 %v729, %v831
    %v900 = vadd.f32 %v730, %v792
    %v901 = vadd.f32 %v731, %v832
    %v902 = vadd.f32 %v732, %v833
    %v903 = vadd.f32 %v733, %v834
    %v904 = vadd.f32 %v734, %v795
    %v905 = vadd.f32 %v735, %v835
    %906 = vst [vmem:[#allocation2] sm:$0xff] %v866
    %907 = vst.msk [vmem:[#allocation2 + $0x8] sm:$0xff] %vm42, %v867
    %908 = vst [vmem:[#allocation2 + $0x10] sm:$0xf] %v868
    %909 = vst.msk [vmem:[#allocation2 + $0x18] sm:$0xf] %vm45, %v869
    %910 = vst [vmem:[#allocation2 + $0x20] sm:$0xff] %v870
    %911 = vst.msk [vmem:[#allocation2 + $0x28] sm:$0xff] %vm42, %v871
    %912 = vst [vmem:[#allocation2 + $0x30] sm:$0xf] %v872
    %913 = vst.msk [vmem:[#allocation2 + $0x38] sm:$0xf] %vm45, %v873
    %914 = vst [vmem:[#allocation2 + $0x40] sm:$0xff] %v874
    %915 = vst.msk [vmem:[#allocation2 + $0x48] sm:$0xff] %vm42, %v875
    %916 = vst [vmem:[#allocation2 + $0x50] sm:$0xf] %v876
    %917 = vst.msk [vmem:[#allocation2 + $0x58] sm:$0xf] %vm45, %v877
    %918 = vst [vmem:[#allocation2 + $0x60] sm:$0xff] %v878
    %919 = vst.msk [vmem:[#allocation2 + $0x68] sm:$0xff] %vm42, %v879
    %920 = vst [vmem:[#allocation2 + $0x70] sm:$0xf] %v880
    %921 = vst.msk [vmem:[#allocation2 + $0x78] sm:$0xf] %vm45, %v881
    %922 = vst [vmem:[#allocation2 + $0x80] sm:$0xff] %v882
    %923 = vst.msk [vmem:[#allocation2 + $0x88] sm:$0xff] %vm42, %v883
    %924 = vst [vmem:[#allocation2 + $0x90] sm:$0xf] %v884
    %925 = vst.msk [vmem:[#allocation2 + $0x98] sm:$0xf] %vm45, %v885
    %926 = vst [vmem:[#allocation2 + $0xa0] sm:$0xff] %v886
    %927 = vst.msk [vmem:[#allocation2 + $0xa8] sm:$0xff] %vm42, %v887
    %928 = vst [vmem:[#allocation2 + $0xb0] sm:$0xf] %v888
    %929 = vst.msk [vmem:[#allocation2 + $0xb8] sm:$0xf] %vm45, %v889
    %930 = vst [vmem:[#allocation2 + $0xc0] sm:$0xff] %v890
    %931 = vst.msk [vmem:[#allocation2 + $0xc8] sm:$0xff] %vm42, %v891
    %932 = vst [vmem:[#allocation2 + $0xd0] sm:$0xf] %v892
    %933 = vst.msk [vmem:[#allocation2 + $0xd8] sm:$0xf] %vm45, %v893
    %934 = vst [vmem:[#allocation2 + $0xe0] sm:$0xff] %v894
    %935 = vst.msk [vmem:[#allocation2 + $0xe8] sm:$0xff] %vm42, %v895
    %936 = vst [vmem:[#allocation2 + $0xf0] sm:$0xf] %v896
    %937 = vst.msk [vmem:[#allocation2 + $0xf8] sm:$0xf] %vm45, %v897
    %938 = vst [vmem:[#allocation2 + $0x100] sm:$0xff] %v898
    %939 = vst.msk [vmem:[#allocation2 + $0x108] sm:$0xff] %vm42, %v899
    %940 = vst [vmem:[#allocation2 + $0x110] sm:$0xf] %v900
    %941 = vst.msk [vmem:[#allocation2 + $0x118] sm:$0xf] %vm45, %v901
    %942 = vst [vmem:[#allocation2 + $0x120] sm:$0xff] %v902
    %943 = vst.msk [vmem:[#allocation2 + $0x128] sm:$0xff] %vm42, %v903
    %944 = vst [vmem:[#allocation2 + $0x130] sm:$0xf] %v904
    %945 = vst.msk [vmem:[#allocation2 + $0x138] sm:$0xf] %vm45, %v905
    %s946 = scalar_lea.vmem [#allocation3], 16
    %v947 = vld [vmem:[%s946] sm:$0xff]
    %v948 = vld [vmem:[%s946 + $0x8] sm:$0x33]
    %v949 = vld [vmem:[%s946 + $0x10] sm:$0xff]
    %v950 = vld [vmem:[%s946 + $0x18] sm:$0x33]
    %v951 = vld [vmem:[%s946 + $0x20] sm:$0xff]
    %v952 = vld [vmem:[%s946 + $0x28] sm:$0x33]
    %v953 = vld [vmem:[%s946 + $0x30] sm:$0xff]
    %v954 = vld [vmem:[%s946 + $0x38] sm:$0x33]
    %v955 = vld [vmem:[%s946 + $0x40] sm:$0xff]
    %v956 = vld [vmem:[%s946 + $0x48] sm:$0x33]
    %v957 = vld [vmem:[%s946 + $0x50] sm:$0xff]
    %v958 = vld [vmem:[%s946 + $0x58] sm:$0x33]
    %v959 = vld [vmem:[%s946 + $0x60] sm:$0xff]
    %v960 = vld [vmem:[%s946 + $0x68] sm:$0x33]
    %v961 = vld [vmem:[%s946 + $0x70] sm:$0xff]
    %v962 = vld [vmem:[%s946 + $0x78] sm:$0x33]
    %v963 = vld [vmem:[%s946 + $0x80] sm:$0xff]
    %v964 = vld [vmem:[%s946 + $0x88] sm:$0x33]
    %v965 = vld [vmem:[%s946 + $0x90] sm:$0xff]
    %v966 = vld [vmem:[%s946 + $0x98] sm:$0x33]
    %v988 = vunpack.c.l.s4 1983009808
    %v989 = vunpack.c.0.s8 %v988
    %v990 = vlaneseq
    %v991 = vshrl.u32 %v990, 7
    %v992 = vsub.s32 %v989, %v991
    %v993 = vrot.slane %v947, %v992
    %v994 = vcombine.high %v993, %v993
    %v996 = vunpack.c.l.s4 1983009808
    %v997 = vunpack.c.0.s8 %v996
    %v998 = vlaneseq
    %v999 = vshrl.u32 %v998, 7
    %v1000 = vsub.s32 %v997, %v999
    %v1001 = vrot.slane %v948, %v1000
    %v1003 = vunpack.c.l.s4 1983009808
    %v1004 = vunpack.c.0.s8 %v1003
    %v1005 = vlaneseq
    %v1006 = vshrl.u32 %v1005, 7
    %v1007 = vsub.s32 %v1004, %v1006
    %v1008 = vrot.slane %v949, %v1007
    %v1009 = vcombine.high %v1008, %v1008
    %v1011 = vunpack.c.l.s4 1983009808
    %v1012 = vunpack.c.0.s8 %v1011
    %v1013 = vlaneseq
    %v1014 = vshrl.u32 %v1013, 7
    %v1015 = vsub.s32 %v1012, %v1014
    %v1016 = vrot.slane %v950, %v1015
    %v1018 = vunpack.c.l.s4 1983009808
    %v1019 = vunpack.c.0.s8 %v1018
    %v1020 = vlaneseq
    %v1021 = vshrl.u32 %v1020, 7
    %v1022 = vsub.s32 %v1019, %v1021
    %v1023 = vrot.slane %v951, %v1022
    %v1024 = vcombine.high %v1023, %v1023
    %v1026 = vunpack.c.l.s4 1983009808
    %v1027 = vunpack.c.0.s8 %v1026
    %v1028 = vlaneseq
    %v1029 = vshrl.u32 %v1028, 7
    %v1030 = vsub.s32 %v1027, %v1029
    %v1031 = vrot.slane %v952, %v1030
    %v1033 = vunpack.c.l.s4 1983009808
    %v1034 = vunpack.c.0.s8 %v1033
    %v1035 = vlaneseq
    %v1036 = vshrl.u32 %v1035, 7
    %v1037 = vsub.s32 %v1034, %v1036
    %v1038 = vrot.slane %v953, %v1037
    %v1039 = vcombine.high %v1038, %v1038
    %v1041 = vunpack.c.l.s4 1983009808
    %v1042 = vunpack.c.0.s8 %v1041
    %v1043 = vlaneseq
    %v1044 = vshrl.u32 %v1043, 7
    %v1045 = vsub.s32 %v1042, %v1044
    %v1046 = vrot.slane %v954, %v1045
    %v1048 = vunpack.c.l.s4 1983009808
    %v1049 = vunpack.c.0.s8 %v1048
    %v1050 = vlaneseq
    %v1051 = vshrl.u32 %v1050, 7
    %v1052 = vsub.s32 %v1049, %v1051
    %v1053 = vrot.slane %v955, %v1052
    %v1054 = vcombine.high %v1053, %v1053
    %v1056 = vunpack.c.l.s4 1983009808
    %v1057 = vunpack.c.0.s8 %v1056
    %v1058 = vlaneseq
    %v1059 = vshrl.u32 %v1058, 7
    %v1060 = vsub.s32 %v1057, %v1059
    %v1061 = vrot.slane %v956, %v1060
    %v1063 = vunpack.c.l.s4 1983009808
    %v1064 = vunpack.c.0.s8 %v1063
    %v1065 = vlaneseq
    %v1066 = vshrl.u32 %v1065, 7
    %v1067 = vsub.s32 %v1064, %v1066
    %v1068 = vrot.slane %v957, %v1067
    %v1069 = vcombine.high %v1068, %v1068
    %v1071 = vunpack.c.l.s4 1983009808
    %v1072 = vunpack.c.0.s8 %v1071
    %v1073 = vlaneseq
    %v1074 = vshrl.u32 %v1073, 7
    %v1075 = vsub.s32 %v1072, %v1074
    %v1076 = vrot.slane %v958, %v1075
    %v1078 = vunpack.c.l.s4 1983009808
    %v1079 = vunpack.c.0.s8 %v1078
    %v1080 = vlaneseq
    %v1081 = vshrl.u32 %v1080, 7
    %v1082 = vsub.s32 %v1079, %v1081
    %v1083 = vrot.slane %v959, %v1082
    %v1084 = vcombine.high %v1083, %v1083
    %v1086 = vunpack.c.l.s4 1983009808
    %v1087 = vunpack.c.0.s8 %v1086
    %v1088 = vlaneseq
    %v1089 = vshrl.u32 %v1088, 7
    %v1090 = vsub.s32 %v1087, %v1089
    %v1091 = vrot.slane %v960, %v1090
    %v1093 = vunpack.c.l.s4 1983009808
    %v1094 = vunpack.c.0.s8 %v1093
    %v1095 = vlaneseq
    %v1096 = vshrl.u32 %v1095, 7
    %v1097 = vsub.s32 %v1094, %v1096
    %v1098 = vrot.slane %v961, %v1097
    %v1099 = vcombine.high %v1098, %v1098
    %v1101 = vunpack.c.l.s4 1983009808
    %v1102 = vunpack.c.0.s8 %v1101
    %v1103 = vlaneseq
    %v1104 = vshrl.u32 %v1103, 7
    %v1105 = vsub.s32 %v1102, %v1104
    %v1106 = vrot.slane %v962, %v1105
    %v1108 = vunpack.c.l.s4 1983009808
    %v1109 = vunpack.c.0.s8 %v1108
    %v1110 = vlaneseq
    %v1111 = vshrl.u32 %v1110, 7
    %v1112 = vsub.s32 %v1109, %v1111
    %v1113 = vrot.slane %v963, %v1112
    %v1114 = vcombine.high %v1113, %v1113
    %v1116 = vunpack.c.l.s4 1983009808
    %v1117 = vunpack.c.0.s8 %v1116
    %v1118 = vlaneseq
    %v1119 = vshrl.u32 %v1118, 7
    %v1120 = vsub.s32 %v1117, %v1119
    %v1121 = vrot.slane %v964, %v1120
    %v1123 = vunpack.c.l.s4 1983009808
    %v1124 = vunpack.c.0.s8 %v1123
    %v1125 = vlaneseq
    %v1126 = vshrl.u32 %v1125, 7
    %v1127 = vsub.s32 %v1124, %v1126
    %v1128 = vrot.slane %v965, %v1127
    %v1129 = vcombine.high %v1128, %v1128
    %v1131 = vunpack.c.l.s4 1983009808
    %v1132 = vunpack.c.0.s8 %v1131
    %v1133 = vlaneseq
    %v1134 = vshrl.u32 %v1133, 7
    %v1135 = vsub.s32 %v1132, %v1134
    %v1136 = vrot.slane %v966, %v1135
    %s1137 = scalar_lea.vmem [#allocation6], 192
    %v1138 = vld [vmem:[%s1137] sm:$0xff]
    %v1139 = vld [vmem:[%s1137 + $0x8] sm:$0xff]
    %v1140 = vld [vmem:[%s1137 + $0x10] sm:$0xff]
    %v1141 = vld [vmem:[%s1137 + $0x18] sm:$0xff]
    %v1142 = vld [vmem:[%s1137 + $0x20] sm:$0xff]
    %v1143 = vld [vmem:[%s1137 + $0x28] sm:$0xff]
    %v1144 = vld [vmem:[%s1137 + $0x30] sm:$0xff]
    %v1145 = vld [vmem:[%s1137 + $0x38] sm:$0xff]
    %v1146 = vld [vmem:[%s1137 + $0x40] sm:$0xff]
    %v1147 = vld [vmem:[%s1137 + $0x48] sm:$0xff]
    %v1148 = vld [vmem:[%s1137 + $0x50] sm:$0xff]
    %v1149 = vld [vmem:[%s1137 + $0x58] sm:$0xff]
    %v1150 = vld [vmem:[%s1137 + $0x60] sm:$0xff]
    %v1151 = vld [vmem:[%s1137 + $0x68] sm:$0xff]
    %v1152 = vld [vmem:[%s1137 + $0x70] sm:$0xff]
    %v1153 = vld [vmem:[%s1137 + $0x78] sm:$0xff]
    %v1154 = vld [vmem:[%s1137 + $0x80] sm:$0xff]
    %v1155 = vld [vmem:[%s1137 + $0x88] sm:$0xff]
    %v1156 = vld [vmem:[%s1137 + $0x90] sm:$0xff]
    %v1157 = vld [vmem:[%s1137 + $0x98] sm:$0xff]
    %v1158 = vld [vmem:[%s1137 + $0xa0] sm:$0xff]
    %v1159 = vld [vmem:[%s1137 + $0xa8] sm:$0xff]
    %v1160 = vld [vmem:[%s1137 + $0xb0] sm:$0xff]
    %v1161 = vld [vmem:[%s1137 + $0xb8] sm:$0xff]
    %v1162 = vcombine.low %v993, %v994
    %v1163 = vcombine.low %v1001, %v1008
    %v1165 = vunpack.c.l.s4 1983009808
    %v1166 = vunpack.c.0.s8 %v1165
    %v1167 = vlaneseq
    %v1168 = vshrl.u32 %v1167, 7
    %v1169 = vsub.s32 %v1166, %v1168
    %v1170 = vrot.slane %v1162, %v1169
    %v1172 = vunpack.c.l.s4 1983009808
    %v1173 = vunpack.c.0.s8 %v1172
    %v1174 = vlaneseq
    %v1175 = vshrl.u32 %v1174, 7
    %v1176 = vsub.s32 %v1173, %v1175
    %v1177 = vrot.slane %v1163, %v1176
    %v1178 = vcombine.low %v1170, %v1177
    %v1179 = vcombine.high %v1170, %v1177
    %v1180 = vcombine.low %v1009, %v1016
    %v1181 = vcombine.low %v1023, %v1024
    %v1183 = vunpack.c.l.s4 1983009808
    %v1184 = vunpack.c.0.s8 %v1183
    %v1185 = vlaneseq
    %v1186 = vshrl.u32 %v1185, 7
    %v1187 = vsub.s32 %v1184, %v1186
    %v1188 = vrot.slane %v1180, %v1187
    %v1190 = vunpack.c.l.s4 1983009808
    %v1191 = vunpack.c.0.s8 %v1190
    %v1192 = vlaneseq
    %v1193 = vshrl.u32 %v1192, 7
    %v1194 = vsub.s32 %v1191, %v1193
    %v1195 = vrot.slane %v1181, %v1194
    %v1196 = vcombine.low %v1188, %v1195
    %v1197 = vcombine.high %v1188, %v1195
    %v1198 = vcombine.low %v1031, %v1038
    %v1199 = vcombine.low %v1039, %v1046
    %v1201 = vunpack.c.l.s4 1983009808
    %v1202 = vunpack.c.0.s8 %v1201
    %v1203 = vlaneseq
    %v1204 = vshrl.u32 %v1203, 7
    %v1205 = vsub.s32 %v1202, %v1204
    %v1206 = vrot.slane %v1198, %v1205
    %v1208 = vunpack.c.l.s4 1983009808
    %v1209 = vunpack.c.0.s8 %v1208
    %v1210 = vlaneseq
    %v1211 = vshrl.u32 %v1210, 7
    %v1212 = vsub.s32 %v1209, %v1211
    %v1213 = vrot.slane %v1199, %v1212
    %v1214 = vcombine.low %v1206, %v1213
    %v1215 = vcombine.high %v1206, %v1213
    %v1216 = vcombine.low %v1053, %v1054
    %v1217 = vcombine.low %v1061, %v1068
    %v1219 = vunpack.c.l.s4 1983009808
    %v1220 = vunpack.c.0.s8 %v1219
    %v1221 = vlaneseq
    %v1222 = vshrl.u32 %v1221, 7
    %v1223 = vsub.s32 %v1220, %v1222
    %v1224 = vrot.slane %v1216, %v1223
    %v1226 = vunpack.c.l.s4 1983009808
    %v1227 = vunpack.c.0.s8 %v1226
    %v1228 = vlaneseq
    %v1229 = vshrl.u32 %v1228, 7
    %v1230 = vsub.s32 %v1227, %v1229
    %v1231 = vrot.slane %v1217, %v1230
    %v1232 = vcombine.low %v1224, %v1231
    %v1233 = vcombine.high %v1224, %v1231
    %v1234 = vcombine.low %v1069, %v1076
    %v1235 = vcombine.low %v1083, %v1084
    %v1237 = vunpack.c.l.s4 1983009808
    %v1238 = vunpack.c.0.s8 %v1237
    %v1239 = vlaneseq
    %v1240 = vshrl.u32 %v1239, 7
    %v1241 = vsub.s32 %v1238, %v1240
    %v1242 = vrot.slane %v1234, %v1241
    %v1244 = vunpack.c.l.s4 1983009808
    %v1245 = vunpack.c.0.s8 %v1244
    %v1246 = vlaneseq
    %v1247 = vshrl.u32 %v1246, 7
    %v1248 = vsub.s32 %v1245, %v1247
    %v1249 = vrot.slane %v1235, %v1248
    %v1250 = vcombine.low %v1242, %v1249
    %v1251 = vcombine.high %v1242, %v1249
    %v1252 = vcombine.low %v1091, %v1098
    %v1253 = vcombine.low %v1099, %v1106
    %v1255 = vunpack.c.l.s4 1983009808
    %v1256 = vunpack.c.0.s8 %v1255
    %v1257 = vlaneseq
    %v1258 = vshrl.u32 %v1257, 7
    %v1259 = vsub.s32 %v1256, %v1258
    %v1260 = vrot.slane %v1252, %v1259
    %v1262 = vunpack.c.l.s4 1983009808
    %v1263 = vunpack.c.0.s8 %v1262
    %v1264 = vlaneseq
    %v1265 = vshrl.u32 %v1264, 7
    %v1266 = vsub.s32 %v1263, %v1265
    %v1267 = vrot.slane %v1253, %v1266
    %v1268 = vcombine.low %v1260, %v1267
    %v1269 = vcombine.high %v1260, %v1267
    %v1270 = vcombine.low %v1113, %v1114
    %v1271 = vcombine.low %v1121, %v1128
    %v1273 = vunpack.c.l.s4 1983009808
    %v1274 = vunpack.c.0.s8 %v1273
    %v1275 = vlaneseq
    %v1276 = vshrl.u32 %v1275, 7
    %v1277 = vsub.s32 %v1274, %v1276
    %v1278 = vrot.slane %v1270, %v1277
    %v1280 = vunpack.c.l.s4 1983009808
    %v1281 = vunpack.c.0.s8 %v1280
    %v1282 = vlaneseq
    %v1283 = vshrl.u32 %v1282, 7
    %v1284 = vsub.s32 %v1281, %v1283
    %v1285 = vrot.slane %v1271, %v1284
    %v1286 = vcombine.low %v1278, %v1285
    %v1287 = vcombine.high %v1278, %v1285
    %v1288 = vcombine.low %v1129, %v1136
    %v1290 = vunpack.c.l.s4 1983009808
    %v1291 = vunpack.c.0.s8 %v1290
    %v1292 = vlaneseq
    %v1293 = vshrl.u32 %v1292, 7
    %v1294 = vsub.s32 %v1291, %v1293
    %v1295 = vrot.slane %v1288, %v1294
    %v1296 = vcombine.high %v1295, %v1295
    %v1329 = vunpack.c.l.b16 %v1138
    %v1330 = vunpack.c.h.b16 %v1138
    %v1331 = vunpack.c.l.b16 %v1139
    %v1332 = vunpack.c.h.b16 %v1139
    %v1333 = vunpack.c.l.b16 %v1140
    %v1334 = vunpack.c.h.b16 %v1140
    %v1335 = vunpack.c.l.b16 %v1141
    %v1336 = vunpack.c.h.b16 %v1141
    %v1337 = vunpack.c.l.b16 %v1142
    %v1338 = vunpack.c.h.b16 %v1142
    %v1339 = vunpack.c.l.b16 %v1143
    %v1340 = vunpack.c.h.b16 %v1143
    %v1341 = vunpack.c.l.b16 %v1144
    %v1342 = vunpack.c.h.b16 %v1144
    %v1343 = vunpack.c.l.b16 %v1145
    %v1344 = vunpack.c.h.b16 %v1145
    %v1345 = vunpack.c.l.b16 %v1146
    %v1346 = vunpack.c.h.b16 %v1146
    %v1347 = vunpack.c.l.b16 %v1147
    %v1348 = vunpack.c.h.b16 %v1147
    %v1349 = vunpack.c.l.b16 %v1148
    %v1350 = vunpack.c.h.b16 %v1148
    %v1351 = vunpack.c.l.b16 %v1149
    %v1352 = vunpack.c.h.b16 %v1149
    %v1353 = vunpack.c.l.b16 %v1150
    %v1354 = vunpack.c.h.b16 %v1150
    %v1355 = vunpack.c.l.b16 %v1151
    %v1356 = vunpack.c.h.b16 %v1151
    %v1357 = vunpack.c.l.b16 %v1152
    %v1358 = vunpack.c.h.b16 %v1152
    %v1359 = vunpack.c.l.b16 %v1153
    %v1360 = vunpack.c.h.b16 %v1153
    %v1361 = vunpack.c.l.b16 %v1154
    %v1362 = vunpack.c.h.b16 %v1154
    %v1363 = vunpack.c.l.b16 %v1155
    %v1364 = vunpack.c.h.b16 %v1155
    %v1365 = vunpack.c.l.b16 %v1156
    %v1366 = vunpack.c.h.b16 %v1156
    %v1367 = vunpack.c.l.b16 %v1157
    %v1368 = vunpack.c.h.b16 %v1157
    %v1369 = vunpack.c.l.b16 %v1158
    %v1370 = vunpack.c.h.b16 %v1158
    %v1371 = vunpack.c.l.b16 %v1159
    %v1372 = vunpack.c.h.b16 %v1159
    %v1373 = vunpack.c.l.b16 %v1160
    %v1374 = vunpack.c.h.b16 %v1160
    %v1375 = vunpack.c.l.b16 %v1161
    %v1376 = vunpack.c.h.b16 %v1161
    %v1377 = vpack.c.b16 %v1331, %v1329
    %v1378 = vpack.c.b16 %v1332, %v1330
    %v1379 = vpack.c.b16 %v1335, %v1333
    %v1380 = vpack.c.b16 %v1336, %v1334
    %v1381 = vpack.c.b16 %v1339, %v1337
    %v1382 = vpack.c.b16 %v1340, %v1338
    %v1383 = vpack.c.b16 %v1343, %v1341
    %v1384 = vpack.c.b16 %v1344, %v1342
    %v1385 = vpack.c.b16 %v1347, %v1345
    %v1386 = vpack.c.b16 %v1348, %v1346
    %v1387 = vpack.c.b16 %v1351, %v1349
    %v1388 = vpack.c.b16 %v1352, %v1350
    %v1389 = vpack.c.b16 %v1355, %v1353
    %v1390 = vpack.c.b16 %v1356, %v1354
    %v1391 = vpack.c.b16 %v1359, %v1357
    %v1392 = vpack.c.b16 %v1360, %v1358
    %v1393 = vpack.c.b16 %v1363, %v1361
    %v1394 = vpack.c.b16 %v1364, %v1362
    %v1395 = vpack.c.b16 %v1367, %v1365
    %v1396 = vpack.c.b16 %v1368, %v1366
    %v1397 = vpack.c.b16 %v1371, %v1369
    %v1398 = vpack.c.b16 %v1372, %v1370
    %v1399 = vpack.c.b16 %v1375, %v1373
    %v1400 = vpack.c.b16 %v1376, %v1374
    %v1426 = vsel %vm560, %v1179, 0
    %v1429 = vsel %vm560, %v1197, 0
    %v1432 = vsel %vm560, %v1215, 0
    %v1435 = vsel %vm560, %v1233, 0
    %v1438 = vsel %vm560, %v1251, 0
    %v1441 = vsel %vm560, %v1269, 0
    %v1444 = vsel %vm560, %v1287, 0
    %v1447 = vsel %vm560, %v1296, 0
    %1449 = vmatprep.subr.bf16.mxu0 %v1378
    %1450 = vmatpush1.bf16.msra.mxu0 %v1377
    %1451 = vmatprep.subr.bf16.mxu0 %v1380
    %1452 = vmatpush1.bf16.msra.mxu0 %v1379
    %1453 = vmatprep.subr.bf16.mxu0 %v1382
    %1454 = vmatpush1.bf16.msra.mxu0 %v1381
    %1455 = vmatprep.subr.bf16.mxu0 %v1384
    %1456 = vmatpush1.bf16.msra.mxu0 %v1383
    %1457 = vmatprep.subr.bf16.mxu0 %v1386
    %1458 = vmatpush1.bf16.msra.mxu0 %v1385
    %1459 = vmatprep.subr.bf16.mxu0 %v1388
    %1460 = vmatpush1.bf16.msra.mxu0 %v1387
    %1461 = vmatprep.subr.bf16.mxu0 %v1390
    %1462 = vmatpush1.bf16.msra.mxu0 %v1389
    %1463 = vmatprep.subr.bf16.mxu0 %v1392
    %1464 = vmatpush1.bf16.msra.mxu0 %v1391
    %1465 = vmatprep.subr.bf16.mxu0 %v1394
    %1466 = vmatpush1.bf16.msra.mxu0 %v1393
    %1467 = vmatprep.subr.bf16.mxu0 %v1396
    %1468 = vmatpush1.bf16.msra.mxu0 %v1395
    %1469 = vmatprep.subr.bf16.mxu0 %v1398
    %1470 = vmatpush1.bf16.msra.mxu0 %v1397
    %1471 = vmatprep.subr.bf16.mxu0 %v1400
    %1472 = vmatpush1.bf16.msra.mxu0 %v1399
    %1473 = vmatprep.subr.bf16.mxu0 0
    %1474 = vmatpush1.bf16.msra.mxu0 0
    %1475 = vmatprep.subr.bf16.mxu0 0
    %1476 = vmatpush1.bf16.msra.mxu0 0
    %1477 = vmatprep.subr.bf16.mxu0 0
    %1478 = vmatpush1.bf16.msra.mxu0 0
    %1479 = vmatprep.subr.bf16.mxu0 0
    %1480 = vmatpush1.bf16.msra.mxu0 0
    %1481 = vmatprep.mubr.bf16.mxu0 %v1426
    %1482 = vmatmul.mubr.bf16.gmra.mrb[0].mxu0 %v1178
    %v1483 = vpop.f32.mrb[0].mxu0
    %v1484 = vadd.f32 0.0, %v1483
    %v1485 = vpop.f32.mrb[0].mxu0
    %v1486 = vadd.f32 0.0, %v1485
    %v1487 = vpop.f32.mrb[0].mxu0
    %v1488 = vadd.f32 0.0, %v1487
    %v1489 = vpop.f32.mrb[0].mxu0
    %v1490 = vadd.f32 0.0, %v1489
    %1491 = vmatprep.mubr.bf16.mxu0 %v1429
    %1492 = vmatmul.mubr.bf16.gmra.mrb[0].mxu0 %v1196
    %v1493 = vpop.f32.mrb[0].mxu0
    %v1494 = vadd.f32 0.0, %v1493
    %v1495 = vpop.f32.mrb[0].mxu0
    %v1496 = vadd.f32 0.0, %v1495
    %v1497 = vpop.f32.mrb[0].mxu0
    %v1498 = vadd.f32 0.0, %v1497
    %v1499 = vpop.f32.mrb[0].mxu0
    %v1500 = vadd.f32 0.0, %v1499
    %1501 = vmatprep.mubr.bf16.mxu0 %v1432
    %1502 = vmatmul.mubr.bf16.gmra.mrb[0].mxu0 %v1214
    %v1503 = vpop.f32.mrb[0].mxu0
    %v1504 = vadd.f32 0.0, %v1503
    %v1505 = vpop.f32.mrb[0].mxu0
    %v1506 = vadd.f32 0.0, %v1505
    %v1507 = vpop.f32.mrb[0].mxu0
    %v1508 = vadd.f32 0.0, %v1507
    %v1509 = vpop.f32.mrb[0].mxu0
    %v1510 = vadd.f32 0.0, %v1509
    %1511 = vmatprep.mubr.bf16.mxu0 %v1435
    %1512 = vmatmul.mubr.bf16.gmra.mrb[0].mxu0 %v1232
    %v1513 = vpop.f32.mrb[0].mxu0
    %v1514 = vadd.f32 0.0, %v1513
    %v1515 = vpop.f32.mrb[0].mxu0
    %v1516 = vadd.f32 0.0, %v1515
    %v1517 = vpop.f32.mrb[0].mxu0
    %v1518 = vadd.f32 0.0, %v1517
    %v1519 = vpop.f32.mrb[0].mxu0
    %v1520 = vadd.f32 0.0, %v1519
    %1521 = vmatprep.mubr.bf16.mxu0 %v1438
    %1522 = vmatmul.mubr.bf16.gmra.mrb[0].mxu0 %v1250
    %v1523 = vpop.f32.mrb[0].mxu0
    %v1524 = vadd.f32 0.0, %v1523
    %v1525 = vpop.f32.mrb[0].mxu0
    %v1526 = vadd.f32 0.0, %v1525
    %v1527 = vpop.f32.mrb[0].mxu0
    %v1528 = vadd.f32 0.0, %v1527
    %v1529 = vpop.f32.mrb[0].mxu0
    %v1530 = vadd.f32 0.0, %v1529
    %1531 = vmatprep.mubr.bf16.mxu0 %v1441
    %1532 = vmatmul.mubr.bf16.gmra.mrb[0].mxu0 %v1268
    %v1533 = vpop.f32.mrb[0].mxu0
    %v1534 = vadd.f32 0.0, %v1533
    %v1535 = vpop.f32.mrb[0].mxu0
    %v1536 = vadd.f32 0.0, %v1535
    %v1537 = vpop.f32.mrb[0].mxu0
    %v1538 = vadd.f32 0.0, %v1537
    %v1539 = vpop.f32.mrb[0].mxu0
    %v1540 = vadd.f32 0.0, %v1539
    %1541 = vmatprep.mubr.bf16.mxu0 %v1444
    %1542 = vmatmul.mubr.bf16.gmra.mrb[0].mxu0 %v1286
    %v1543 = vpop.f32.mrb[0].mxu0
    %v1544 = vadd.f32 0.0, %v1543
    %v1545 = vpop.f32.mrb[0].mxu0
    %v1546 = vadd.f32 0.0, %v1545
    %v1547 = vpop.f32.mrb[0].mxu0
    %v1548 = vadd.f32 0.0, %v1547
    %v1549 = vpop.f32.mrb[0].mxu0
    %v1550 = vadd.f32 0.0, %v1549
    %1551 = vmatprep.mubr.bf16.mxu0 %v1447
    %1552 = vmatmul.mubr.bf16.gmra.mrb[0].mxu0 %v1295
    %v1553 = vpop.f32.mrb[0].mxu0
    %v1554 = vadd.f32 0.0, %v1553
    %v1555 = vpop.f32.mrb[0].mxu0
    %v1556 = vadd.f32 0.0, %v1555
    %v1557 = vpop.f32.mrb[0].mxu0
    %v1558 = vpop.f32.mrb[0].mxu0
    %1559 = vdwg.mxu0
    %v1560 = vld [vmem:[#allocation2] sm:$0xff]
    %v1561 = vld [vmem:[#allocation2 + $0x8] sm:$0xff]
    %v1562 = vld [vmem:[#allocation2 + $0x10] sm:$0xf]
    %v1563 = vld [vmem:[#allocation2 + $0x18] sm:$0xf]
    %v1564 = vld [vmem:[#allocation2 + $0x20] sm:$0xff]
    %v1565 = vld [vmem:[#allocation2 + $0x28] sm:$0xff]
    %v1566 = vld [vmem:[#allocation2 + $0x30] sm:$0xf]
    %v1567 = vld [vmem:[#allocation2 + $0x38] sm:$0xf]
    %v1568 = vld [vmem:[#allocation2 + $0x40] sm:$0xff]
    %v1569 = vld [vmem:[#allocation2 + $0x48] sm:$0xff]
    %v1570 = vld [vmem:[#allocation2 + $0x50] sm:$0xf]
    %v1571 = vld [vmem:[#allocation2 + $0x58] sm:$0xf]
    %v1572 = vld [vmem:[#allocation2 + $0x60] sm:$0xff]
    %v1573 = vld [vmem:[#allocation2 + $0x68] sm:$0xff]
    %v1574 = vld [vmem:[#allocation2 + $0x70] sm:$0xf]
    %v1575 = vld [vmem:[#allocation2 + $0x78] sm:$0xf]
    %v1576 = vld [vmem:[#allocation2 + $0x80] sm:$0xff]
    %v1577 = vld [vmem:[#allocation2 + $0x88] sm:$0xff]
    %v1578 = vld [vmem:[#allocation2 + $0x90] sm:$0xf]
    %v1579 = vld [vmem:[#allocation2 + $0x98] sm:$0xf]
    %v1580 = vld [vmem:[#allocation2 + $0xa0] sm:$0xff]
    %v1581 = vld [vmem:[#allocation2 + $0xa8] sm:$0xff]
    %v1582 = vld [vmem:[#allocation2 + $0xb0] sm:$0xf]
    %v1583 = vld [vmem:[#allocation2 + $0xb8] sm:$0xf]
    %v1584 = vld [vmem:[#allocation2 + $0xc0] sm:$0xff]
    %v1585 = vld [vmem:[#allocation2 + $0xc8] sm:$0xff]
    %v1586 = vld [vmem:[#allocation2 + $0xd0] sm:$0xf]
    %v1587 = vld [vmem:[#allocation2 + $0xd8] sm:$0xf]
    %v1588 = vld [vmem:[#allocation2 + $0xe0] sm:$0xff]
    %v1589 = vld [vmem:[#allocation2 + $0xe8] sm:$0xff]
    %v1590 = vld [vmem:[#allocation2 + $0xf0] sm:$0xf]
    %v1591 = vld [vmem:[#allocation2 + $0xf8] sm:$0xf]
    %v1592 = vld [vmem:[#allocation2 + $0x100] sm:$0xff]
    %v1593 = vld [vmem:[#allocation2 + $0x108] sm:$0xff]
    %v1594 = vld [vmem:[#allocation2 + $0x110] sm:$0xf]
    %v1595 = vld [vmem:[#allocation2 + $0x118] sm:$0xf]
    %v1596 = vld [vmem:[#allocation2 + $0x120] sm:$0xff]
    %v1597 = vld [vmem:[#allocation2 + $0x128] sm:$0xff]
    %v1598 = vld [vmem:[#allocation2 + $0x130] sm:$0xf]
    %v1599 = vld [vmem:[#allocation2 + $0x138] sm:$0xf]
    %v1630 = vcombine.low %v1484, %v1486
    %v1631 = vcombine.high %v1484, %v1486
    %v1632 = vcombine.low %v1488, %v1490
    %v1633 = vcombine.high %v1488, %v1490
    %v1634 = vcombine.low %v1494, %v1496
    %v1635 = vcombine.high %v1494, %v1496
    %v1636 = vcombine.low %v1498, %v1500
    %v1637 = vcombine.high %v1498, %v1500
    %v1638 = vcombine.low %v1504, %v1506
    %v1639 = vcombine.high %v1504, %v1506
    %v1640 = vcombine.low %v1508, %v1510
    %v1641 = vcombine.high %v1508, %v1510
    %v1642 = vcombine.low %v1514, %v1516
    %v1643 = vcombine.high %v1514, %v1516
    %v1644 = vcombine.low %v1518, %v1520
    %v1645 = vcombine.high %v1518, %v1520
    %v1646 = vcombine.low %v1524, %v1526
    %v1647 = vcombine.high %v1524, %v1526
    %v1648 = vcombine.low %v1528, %v1530
    %v1649 = vcombine.high %v1528, %v1530
    %v1650 = vcombine.low %v1534, %v1536
    %v1651 = vcombine.high %v1534, %v1536
    %v1652 = vcombine.low %v1538, %v1540
    %v1653 = vcombine.high %v1538, %v1540
    %v1654 = vcombine.low %v1544, %v1546
    %v1655 = vcombine.high %v1544, %v1546
    %v1656 = vcombine.low %v1548, %v1550
    %v1657 = vcombine.high %v1548, %v1550
    %v1658 = vcombine.low %v1554, %v1556
    %v1659 = vcombine.high %v1554, %v1556
    %v1670 = vcombine.low %v1630, %v1631
    %v1671 = vcombine.high %v1630, %v1631
    %v1672 = vcombine.high %v1632, %v1632
    %v1673 = vcombine.low %v1633, %v1634
    %v1674 = vcombine.high %v1633, %v1634
    %v1675 = vcombine.high %v1635, %v1635
    %v1676 = vcombine.low %v1636, %v1637
    %v1677 = vcombine.high %v1636, %v1637
    %v1678 = vcombine.high %v1638, %v1638
    %v1679 = vcombine.low %v1639, %v1640
    %v1680 = vcombine.high %v1639, %v1640
    %v1681 = vcombine.high %v1641, %v1641
    %v1682 = vcombine.low %v1642, %v1643
    %v1683 = vcombine.high %v1642, %v1643
    %v1684 = vcombine.high %v1644, %v1644
    %v1685 = vcombine.low %v1645, %v1646
    %v1686 = vcombine.high %v1645, %v1646
    %v1687 = vcombine.high %v1647, %v1647
    %v1688 = vcombine.low %v1648, %v1649
    %v1689 = vcombine.high %v1648, %v1649
    %v1690 = vcombine.high %v1650, %v1650
    %v1691 = vcombine.low %v1651, %v1652
    %v1692 = vcombine.high %v1651, %v1652
    %v1693 = vcombine.high %v1653, %v1653
    %v1694 = vcombine.low %v1654, %v1655
    %v1695 = vcombine.high %v1654, %v1655
    %v1696 = vcombine.high %v1656, %v1656
    %v1697 = vcombine.low %v1657, %v1658
    %v1698 = vcombine.high %v1657, %v1658
    %v1699 = vcombine.high %v1659, %v1659
    %v1730 = vadd.f32 %v1560, %v1670
    %v1731 = vadd.f32 %v1561, %v1671
    %v1732 = vadd.f32 %v1562, %v1632
    %v1733 = vadd.f32 %v1563, %v1672
    %v1734 = vadd.f32 %v1564, %v1673
    %v1735 = vadd.f32 %v1565, %v1674
    %v1736 = vadd.f32 %v1566, %v1635
    %v1737 = vadd.f32 %v1567, %v1675
    %v1738 = vadd.f32 %v1568, %v1676
    %v1739 = vadd.f32 %v1569, %v1677
    %v1740 = vadd.f32 %v1570, %v1638
    %v1741 = vadd.f32 %v1571, %v1678
    %v1742 = vadd.f32 %v1572, %v1679
    %v1743 = vadd.f32 %v1573, %v1680
    %v1744 = vadd.f32 %v1574, %v1641
    %v1745 = vadd.f32 %v1575, %v1681
    %v1746 = vadd.f32 %v1576, %v1682
    %v1747 = vadd.f32 %v1577, %v1683
    %v1748 = vadd.f32 %v1578, %v1644
    %v1749 = vadd.f32 %v1579, %v1684
    %v1750 = vadd.f32 %v1580, %v1685
    %v1751 = vadd.f32 %v1581, %v1686
    %v1752 = vadd.f32 %v1582, %v1647
    %v1753 = vadd.f32 %v1583, %v1687
    %v1754 = vadd.f32 %v1584, %v1688
    %v1755 = vadd.f32 %v1585, %v1689
    %v1756 = vadd.f32 %v1586, %v1650
    %v1757 = vadd.f32 %v1587, %v1690
    %v1758 = vadd.f32 %v1588, %v1691
    %v1759 = vadd.f32 %v1589, %v1692
    %v1760 = vadd.f32 %v1590, %v1653
    %v1761 = vadd.f32 %v1591, %v1693
    %v1762 = vadd.f32 %v1592, %v1694
    %v1763 = vadd.f32 %v1593, %v1695
    %v1764 = vadd.f32 %v1594, %v1656
    %v1765 = vadd.f32 %v1595, %v1696
    %v1766 = vadd.f32 %v1596, %v1697
    %v1767 = vadd.f32 %v1597, %v1698
    %v1768 = vadd.f32 %v1598, %v1659
    %v1769 = vadd.f32 %v1599, %v1699
    %1770 = vst [vmem:[#allocation2] sm:$0xff] %v1730
    %1771 = vst.msk [vmem:[#allocation2 + $0x8] sm:$0xff] %vm42, %v1731
    %1772 = vst [vmem:[#allocation2 + $0x10] sm:$0xf] %v1732
    %1773 = vst.msk [vmem:[#allocation2 + $0x18] sm:$0xf] %vm45, %v1733
    %1774 = vst [vmem:[#allocation2 + $0x20] sm:$0xff] %v1734
    %1775 = vst.msk [vmem:[#allocation2 + $0x28] sm:$0xff] %vm42, %v1735
    %1776 = vst [vmem:[#allocation2 + $0x30] sm:$0xf] %v1736
    %1777 = vst.msk [vmem:[#allocation2 + $0x38] sm:$0xf] %vm45, %v1737
    %1778 = vst [vmem:[#allocation2 + $0x40] sm:$0xff] %v1738
    %1779 = vst.msk [vmem:[#allocation2 + $0x48] sm:$0xff] %vm42, %v1739
    %1780 = vst [vmem:[#allocation2 + $0x50] sm:$0xf] %v1740
    %1781 = vst.msk [vmem:[#allocation2 + $0x58] sm:$0xf] %vm45, %v1741
    %1782 = vst [vmem:[#allocation2 + $0x60] sm:$0xff] %v1742
    %1783 = vst.msk [vmem:[#allocation2 + $0x68] sm:$0xff] %vm42, %v1743
    %1784 = vst [vmem:[#allocation2 + $0x70] sm:$0xf] %v1744
    %1785 = vst.msk [vmem:[#allocation2 + $0x78] sm:$0xf] %vm45, %v1745
    %1786 = vst [vmem:[#allocation2 + $0x80] sm:$0xff] %v1746
    %1787 = vst.msk [vmem:[#allocation2 + $0x88] sm:$0xff] %vm42, %v1747
    %1788 = vst [vmem:[#allocation2 + $0x90] sm:$0xf] %v1748
    %1789 = vst.msk [vmem:[#allocation2 + $0x98] sm:$0xf] %vm45, %v1749
    %1790 = vst [vmem:[#allocation2 + $0xa0] sm:$0xff] %v1750
    %1791 = vst.msk [vmem:[#allocation2 + $0xa8] sm:$0xff] %vm42, %v1751
    %1792 = vst [vmem:[#allocation2 + $0xb0] sm:$0xf] %v1752
    %1793 = vst.msk [vmem:[#allocation2 + $0xb8] sm:$0xf] %vm45, %v1753
    %1794 = vst [vmem:[#allocation2 + $0xc0] sm:$0xff] %v1754
    %1795 = vst.msk [vmem:[#allocation2 + $0xc8] sm:$0xff] %vm42, %v1755
    %1796 = vst [vmem:[#allocation2 + $0xd0] sm:$0xf] %v1756
    %1797 = vst.msk [vmem:[#allocation2 + $0xd8] sm:$0xf] %vm45, %v1757
    %1798 = vst [vmem:[#allocation2 + $0xe0] sm:$0xff] %v1758
    %1799 = vst.msk [vmem:[#allocation2 + $0xe8] sm:$0xff] %vm42, %v1759
    %1800 = vst [vmem:[#allocation2 + $0xf0] sm:$0xf] %v1760
    %1801 = vst.msk [vmem:[#allocation2 + $0xf8] sm:$0xf] %vm45, %v1761
    %1802 = vst [vmem:[#allocation2 + $0x100] sm:$0xff] %v1762
    %1803 = vst.msk [vmem:[#allocation2 + $0x108] sm:$0xff] %vm42, %v1763
    %1804 = vst [vmem:[#allocation2 + $0x110] sm:$0xf] %v1764
    %1805 = vst.msk [vmem:[#allocation2 + $0x118] sm:$0xf] %vm45, %v1765
    %1806 = vst [vmem:[#allocation2 + $0x120] sm:$0xff] %v1766
    %1807 = vst.msk [vmem:[#allocation2 + $0x128] sm:$0xff] %vm42, %v1767
    %1808 = vst [vmem:[#allocation2 + $0x130] sm:$0xf] %v1768
    %1809 = vst.msk [vmem:[#allocation2 + $0x138] sm:$0xf] %vm45, %v1769
    %s1810 = scalar_lea.vmem [#allocation3], 32
    %v1811 = vld [vmem:[%s1810] sm:$0xff]
    %v1812 = vld [vmem:[%s1810 + $0x8] sm:$0x33]
    %v1813 = vld [vmem:[%s1810 + $0x10] sm:$0xff]
    %v1814 = vld [vmem:[%s1810 + $0x18] sm:$0x33]
    %v1815 = vld [vmem:[%s1810 + $0x20] sm:$0xff]
    %v1816 = vld [vmem:[%s1810 + $0x28] sm:$0x33]
    %v1817 = vld [vmem:[%s1810 + $0x30] sm:$0xff]
    %v1818 = vld [vmem:[%s1810 + $0x38] sm:$0x33]
    %v1819 = vld [vmem:[%s1810 + $0x40] sm:$0xff]
    %v1820 = vld [vmem:[%s1810 + $0x48] sm:$0x33]
    %v1821 = vld [vmem:[%s1810 + $0x50] sm:$0xff]
    %v1822 = vld [vmem:[%s1810 + $0x58] sm:$0x33]
    %v1823 = vld [vmem:[%s1810 + $0x60] sm:$0xff]
    %v1824 = vld [vmem:[%s1810 + $0x68] sm:$0x33]
    %v1825 = vld [vmem:[%s1810 + $0x70] sm:$0xff]
    %v1826 = vld [vmem:[%s1810 + $0x78] sm:$0x33]
    %v1827 = vld [vmem:[%s1810 + $0x80] sm:$0xff]
    %v1828 = vld [vmem:[%s1810 + $0x88] sm:$0x33]
    %v1829 = vld [vmem:[%s1810 + $0x90] sm:$0xff]
    %v1830 = vld [vmem:[%s1810 + $0x98] sm:$0x33]
    %v1852 = vunpack.c.l.s4 1983009808
    %v1853 = vunpack.c.0.s8 %v1852
    %v1854 = vlaneseq
    %v1855 = vshrl.u32 %v1854, 7
    %v1856 = vsub.s32 %v1853, %v1855
    %v1857 = vrot.slane %v1811, %v1856
    %v1858 = vcombine.high %v1857, %v1857
    %v1860 = vunpack.c.l.s4 1983009808
    %v1861 = vunpack.c.0.s8 %v1860
    %v1862 = vlaneseq
    %v1863 = vshrl.u32 %v1862, 7
    %v1864 = vsub.s32 %v1861, %v1863
    %v1865 = vrot.slane %v1812, %v1864
    %v1867 = vunpack.c.l.s4 1983009808
    %v1868 = vunpack.c.0.s8 %v1867
    %v1869 = vlaneseq
    %v1870 = vshrl.u32 %v1869, 7
    %v1871 = vsub.s32 %v1868, %v1870
    %v1872 = vrot.slane %v1813, %v1871
    %v1873 = vcombine.high %v1872, %v1872
    %v1875 = vunpack.c.l.s4 1983009808
    %v1876 = vunpack.c.0.s8 %v1875
    %v1877 = vlaneseq
    %v1878 = vshrl.u32 %v1877, 7
    %v1879 = vsub.s32 %v1876, %v1878
    %v1880 = vrot.slane %v1814, %v1879
    %v1882 = vunpack.c.l.s4 1983009808
    %v1883 = vunpack.c.0.s8 %v1882
    %v1884 = vlaneseq
    %v1885 = vshrl.u32 %v1884, 7
    %v1886 = vsub.s32 %v1883, %v1885
    %v1887 = vrot.slane %v1815, %v1886
    %v1888 = vcombine.high %v1887, %v1887
    %v1890 = vunpack.c.l.s4 1983009808
    %v1891 = vunpack.c.0.s8 %v1890
    %v1892 = vlaneseq
    %v1893 = vshrl.u32 %v1892, 7
    %v1894 = vsub.s32 %v1891, %v1893
    %v1895 = vrot.slane %v1816, %v1894
    %v1897 = vunpack.c.l.s4 1983009808
    %v1898 = vunpack.c.0.s8 %v1897
    %v1899 = vlaneseq
    %v1900 = vshrl.u32 %v1899, 7
    %v1901 = vsub.s32 %v1898, %v1900
    %v1902 = vrot.slane %v1817, %v1901
    %v1903 = vcombine.high %v1902, %v1902
    %v1905 = vunpack.c.l.s4 1983009808
    %v1906 = vunpack.c.0.s8 %v1905
    %v1907 = vlaneseq
    %v1908 = vshrl.u32 %v1907, 7
    %v1909 = vsub.s32 %v1906, %v1908
    %v1910 = vrot.slane %v1818, %v1909
    %v1912 = vunpack.c.l.s4 1983009808
    %v1913 = vunpack.c.0.s8 %v1912
    %v1914 = vlaneseq
    %v1915 = vshrl.u32 %v1914, 7
    %v1916 = vsub.s32 %v1913, %v1915
    %v1917 = vrot.slane %v1819, %v1916
    %v1918 = vcombine.high %v1917, %v1917
    %v1920 = vunpack.c.l.s4 1983009808
    %v1921 = vunpack.c.0.s8 %v1920
    %v1922 = vlaneseq
    %v1923 = vshrl.u32 %v1922, 7
    %v1924 = vsub.s32 %v1921, %v1923
    %v1925 = vrot.slane %v1820, %v1924
    %v1927 = vunpack.c.l.s4 1983009808
    %v1928 = vunpack.c.0.s8 %v1927
    %v1929 = vlaneseq
    %v1930 = vshrl.u32 %v1929, 7
    %v1931 = vsub.s32 %v1928, %v1930
    %v1932 = vrot.slane %v1821, %v1931
    %v1933 = vcombine.high %v1932, %v1932
    %v1935 = vunpack.c.l.s4 1983009808
    %v1936 = vunpack.c.0.s8 %v1935
    %v1937 = vlaneseq
    %v1938 = vshrl.u32 %v1937, 7
    %v1939 = vsub.s32 %v1936, %v1938
    %v1940 = vrot.slane %v1822, %v1939
    %v1942 = vunpack.c.l.s4 1983009808
    %v1943 = vunpack.c.0.s8 %v1942
    %v1944 = vlaneseq
    %v1945 = vshrl.u32 %v1944, 7
    %v1946 = vsub.s32 %v1943, %v1945
    %v1947 = vrot.slane %v1823, %v1946
    %v1948 = vcombine.high %v1947, %v1947
    %v1950 = vunpack.c.l.s4 1983009808
    %v1951 = vunpack.c.0.s8 %v1950
    %v1952 = vlaneseq
    %v1953 = vshrl.u32 %v1952, 7
    %v1954 = vsub.s32 %v1951, %v1953
    %v1955 = vrot.slane %v1824, %v1954
    %v1957 = vunpack.c.l.s4 1983009808
    %v1958 = vunpack.c.0.s8 %v1957
    %v1959 = vlaneseq
    %v1960 = vshrl.u32 %v1959, 7
    %v1961 = vsub.s32 %v1958, %v1960
    %v1962 = vrot.slane %v1825, %v1961
    %v1963 = vcombine.high %v1962, %v1962
    %v1965 = vunpack.c.l.s4 1983009808
    %v1966 = vunpack.c.0.s8 %v1965
    %v1967 = vlaneseq
    %v1968 = vshrl.u32 %v1967, 7
    %v1969 = vsub.s32 %v1966, %v1968
    %v1970 = vrot.slane %v1826, %v1969
    %v1972 = vunpack.c.l.s4 1983009808
    %v1973 = vunpack.c.0.s8 %v1972
    %v1974 = vlaneseq
    %v1975 = vshrl.u32 %v1974, 7
    %v1976 = vsub.s32 %v1973, %v1975
    %v1977 = vrot.slane %v1827, %v1976
    %v1978 = vcombine.high %v1977, %v1977
    %v1980 = vunpack.c.l.s4 1983009808
    %v1981 = vunpack.c.0.s8 %v1980
    %v1982 = vlaneseq
    %v1983 = vshrl.u32 %v1982, 7
    %v1984 = vsub.s32 %v1981, %v1983
    %v1985 = vrot.slane %v1828, %v1984
    %v1987 = vunpack.c.l.s4 1983009808
    %v1988 = vunpack.c.0.s8 %v1987
    %v1989 = vlaneseq
    %v1990 = vshrl.u32 %v1989, 7
    %v1991 = vsub.s32 %v1988, %v1990
    %v1992 = vrot.slane %v1829, %v1991
    %v1993 = vcombine.high %v1992, %v1992
    %v1995 = vunpack.c.l.s4 1983009808
    %v1996 = vunpack.c.0.s8 %v1995
    %v1997 = vlaneseq
    %v1998 = vshrl.u32 %v1997, 7
    %v1999 = vsub.s32 %v1996, %v1998
    %v2000 = vrot.slane %v1830, %v1999
    %s2001 = scalar_lea.vmem [#allocation6], 384
    %v2002 = vld [vmem:[%s2001] sm:$0xff]
    %v2003 = vld [vmem:[%s2001 + $0x8] sm:$0xff]
    %v2004 = vld [vmem:[%s2001 + $0x10] sm:$0xff]
    %v2005 = vld [vmem:[%s2001 + $0x18] sm:$0xff]
    %v2006 = vld [vmem:[%s2001 + $0x20] sm:$0xff]
    %v2007 = vld [vmem:[%s2001 + $0x28] sm:$0xff]
    %v2008 = vld [vmem:[%s2001 + $0x30] sm:$0xff]
    %v2009 = vld [vmem:[%s2001 + $0x38] sm:$0xff]
    %v2010 = vld [vmem:[%s2001 + $0x40] sm:$0xff]
    %v2011 = vld [vmem:[%s2001 + $0x48] sm:$0xff]
    %v2012 = vld [vmem:[%s2001 + $0x50] sm:$0xff]
    %v2013 = vld [vmem:[%s2001 + $0x58] sm:$0xff]
    %v2014 = vld [vmem:[%s2001 + $0x60] sm:$0xff]
    %v2015 = vld [vmem:[%s2001 + $0x68] sm:$0xff]
    %v2016 = vld [vmem:[%s2001 + $0x70] sm:$0xff]
    %v2017 = vld [vmem:[%s2001 + $0x78] sm:$0xff]
    %v2018 = vld [vmem:[%s2001 + $0x80] sm:$0xff]
    %v2019 = vld [vmem:[%s2001 + $0x88] sm:$0xff]
    %v2020 = vld [vmem:[%s2001 + $0x90] sm:$0xff]
    %v2021 = vld [vmem:[%s2001 + $0x98] sm:$0xff]
    %v2022 = vld [vmem:[%s2001 + $0xa0] sm:$0xff]
    %v2023 = vld [vmem:[%s2001 + $0xa8] sm:$0xff]
    %v2024 = vld [vmem:[%s2001 + $0xb0] sm:$0xff]
    %v2025 = vld [vmem:[%s2001 + $0xb8] sm:$0xff]
    %v2026 = vcombine.low %v1857, %v1858
    %v2027 = vcombine.low %v1865, %v1872
    %v2029 = vunpack.c.l.s4 1983009808
    %v2030 = vunpack.c.0.s8 %v2029
    %v2031 = vlaneseq
    %v2032 = vshrl.u32 %v2031, 7
    %v2033 = vsub.s32 %v2030, %v2032
    %v2034 = vrot.slane %v2026, %v2033
    %v2036 = vunpack.c.l.s4 1983009808
    %v2037 = vunpack.c.0.s8 %v2036
    %v2038 = vlaneseq
    %v2039 = vshrl.u32 %v2038, 7
    %v2040 = vsub.s32 %v2037, %v2039
    %v2041 = vrot.slane %v2027, %v2040
    %v2042 = vcombine.low %v2034, %v2041
    %v2043 = vcombine.high %v2034, %v2041
    %v2044 = vcombine.low %v1873, %v1880
    %v2045 = vcombine.low %v1887, %v1888
    %v2047 = vunpack.c.l.s4 1983009808
    %v2048 = vunpack.c.0.s8 %v2047
    %v2049 = vlaneseq
    %v2050 = vshrl.u32 %v2049, 7
    %v2051 = vsub.s32 %v2048, %v2050
    %v2052 = vrot.slane %v2044, %v2051
    %v2054 = vunpack.c.l.s4 1983009808
    %v2055 = vunpack.c.0.s8 %v2054
    %v2056 = vlaneseq
    %v2057 = vshrl.u32 %v2056, 7
    %v2058 = vsub.s32 %v2055, %v2057
    %v2059 = vrot.slane %v2045, %v2058
    %v2060 = vcombine.low %v2052, %v2059
    %v2061 = vcombine.high %v2052, %v2059
    %v2062 = vcombine.low %v1895, %v1902
    %v2063 = vcombine.low %v1903, %v1910
    %v2065 = vunpack.c.l.s4 1983009808
    %v2066 = vunpack.c.0.s8 %v2065
    %v2067 = vlaneseq
    %v2068 = vshrl.u32 %v2067, 7
    %v2069 = vsub.s32 %v2066, %v2068
    %v2070 = vrot.slane %v2062, %v2069
    %v2072 = vunpack.c.l.s4 1983009808
    %v2073 = vunpack.c.0.s8 %v2072
    %v2074 = vlaneseq
    %v2075 = vshrl.u32 %v2074, 7
    %v2076 = vsub.s32 %v2073, %v2075
    %v2077 = vrot.slane %v2063, %v2076
    %v2078 = vcombine.low %v2070, %v2077
    %v2079 = vcombine.high %v2070, %v2077
    %v2080 = vcombine.low %v1917, %v1918
    %v2081 = vcombine.low %v1925, %v1932
    %v2083 = vunpack.c.l.s4 1983009808
    %v2084 = vunpack.c.0.s8 %v2083
    %v2085 = vlaneseq
    %v2086 = vshrl.u32 %v2085, 7
    %v2087 = vsub.s32 %v2084, %v2086
    %v2088 = vrot.slane %v2080, %v2087
    %v2090 = vunpack.c.l.s4 1983009808
    %v2091 = vunpack.c.0.s8 %v2090
    %v2092 = vlaneseq
    %v2093 = vshrl.u32 %v2092, 7
    %v2094 = vsub.s32 %v2091, %v2093
    %v2095 = vrot.slane %v2081, %v2094
    %v2096 = vcombine.low %v2088, %v2095
    %v2097 = vcombine.high %v2088, %v2095
    %v2098 = vcombine.low %v1933, %v1940
    %v2099 = vcombine.low %v1947, %v1948
    %v2101 = vunpack.c.l.s4 1983009808
    %v2102 = vunpack.c.0.s8 %v2101
    %v2103 = vlaneseq
    %v2104 = vshrl.u32 %v2103, 7
    %v2105 = vsub.s32 %v2102, %v2104
    %v2106 = vrot.slane %v2098, %v2105
    %v2108 = vunpack.c.l.s4 1983009808
    %v2109 = vunpack.c.0.s8 %v2108
    %v2110 = vlaneseq
    %v2111 = vshrl.u32 %v2110, 7
    %v2112 = vsub.s32 %v2109, %v2111
    %v2113 = vrot.slane %v2099, %v2112
    %v2114 = vcombine.low %v2106, %v2113
    %v2115 = vcombine.high %v2106, %v2113
    %v2116 = vcombine.low %v1955, %v1962
    %v2117 = vcombine.low %v1963, %v1970
    %v2119 = vunpack.c.l.s4 1983009808
    %v2120 = vunpack.c.0.s8 %v2119
    %v2121 = vlaneseq
    %v2122 = vshrl.u32 %v2121, 7
    %v2123 = vsub.s32 %v2120, %v2122
    %v2124 = vrot.slane %v2116, %v2123
    %v2126 = vunpack.c.l.s4 1983009808
    %v2127 = vunpack.c.0.s8 %v2126
    %v2128 = vlaneseq
    %v2129 = vshrl.u32 %v2128, 7
    %v2130 = vsub.s32 %v2127, %v2129
    %v2131 = vrot.slane %v2117, %v2130
    %v2132 = vcombine.low %v2124, %v2131
    %v2133 = vcombine.high %v2124, %v2131
    %v2134 = vcombine.low %v1977, %v1978
    %v2135 = vcombine.low %v1985, %v1992
    %v2137 = vunpack.c.l.s4 1983009808
    %v2138 = vunpack.c.0.s8 %v2137
    %v2139 = vlaneseq
    %v2140 = vshrl.u32 %v2139, 7
    %v2141 = vsub.s32 %v2138, %v2140
    %v2142 = vrot.slane %v2134, %v2141
    %v2144 = vunpack.c.l.s4 1983009808
    %v2145 = vunpack.c.0.s8 %v2144
    %v2146 = vlaneseq
    %v2147 = vshrl.u32 %v2146, 7
    %v2148 = vsub.s32 %v2145, %v2147
    %v2149 = vrot.slane %v2135, %v2148
    %v2150 = vcombine.low %v2142, %v2149
    %v2151 = vcombine.high %v2142, %v2149
    %v2152 = vcombine.low %v1993, %v2000
    %v2154 = vunpack.c.l.s4 1983009808
    %v2155 = vunpack.c.0.s8 %v2154
    %v2156 = vlaneseq
    %v2157 = vshrl.u32 %v2156, 7
    %v2158 = vsub.s32 %v2155, %v2157
    %v2159 = vrot.slane %v2152, %v2158
    %v2160 = vcombine.high %v2159, %v2159
    %v2193 = vunpack.c.l.b16 %v2002
    %v2194 = vunpack.c.h.b16 %v2002
    %v2195 = vunpack.c.l.b16 %v2003
    %v2196 = vunpack.c.h.b16 %v2003
    %v2197 = vunpack.c.l.b16 %v2004
    %v2198 = vunpack.c.h.b16 %v2004
    %v2199 = vunpack.c.l.b16 %v2005
    %v2200 = vunpack.c.h.b16 %v2005
    %v2201 = vunpack.c.l.b16 %v2006
    %v2202 = vunpack.c.h.b16 %v2006
    %v2203 = vunpack.c.l.b16 %v2007
    %v2204 = vunpack.c.h.b16 %v2007
    %v2205 = vunpack.c.l.b16 %v2008
    %v2206 = vunpack.c.h.b16 %v2008
    %v2207 = vunpack.c.l.b16 %v2009
    %v2208 = vunpack.c.h.b16 %v2009
    %v2209 = vunpack.c.l.b16 %v2010
    %v2210 = vunpack.c.h.b16 %v2010
    %v2211 = vunpack.c.l.b16 %v2011
    %v2212 = vunpack.c.h.b16 %v2011
    %v2213 = vunpack.c.l.b16 %v2012
    %v2214 = vunpack.c.h.b16 %v2012
    %v2215 = vunpack.c.l.b16 %v2013
    %v2216 = vunpack.c.h.b16 %v2013
    %v2217 = vunpack.c.l.b16 %v2014
    %v2218 = vunpack.c.h.b16 %v2014
    %v2219 = vunpack.c.l.b16 %v2015
    %v2220 = vunpack.c.h.b16 %v2015
    %v2221 = vunpack.c.l.b16 %v2016
    %v2222 = vunpack.c.h.b16 %v2016
    %v2223 = vunpack.c.l.b16 %v2017
    %v2224 = vunpack.c.h.b16 %v2017
    %v2225 = vunpack.c.l.b16 %v2018
    %v2226 = vunpack.c.h.b16 %v2018
    %v2227 = vunpack.c.l.b16 %v2019
    %v2228 = vunpack.c.h.b16 %v2019
    %v2229 = vunpack.c.l.b16 %v2020
    %v2230 = vunpack.c.h.b16 %v2020
    %v2231 = vunpack.c.l.b16 %v2021
    %v2232 = vunpack.c.h.b16 %v2021
    %v2233 = vunpack.c.l.b16 %v2022
    %v2234 = vunpack.c.h.b16 %v2022
    %v2235 = vunpack.c.l.b16 %v2023
    %v2236 = vunpack.c.h.b16 %v2023
    %v2237 = vunpack.c.l.b16 %v2024
    %v2238 = vunpack.c.h.b16 %v2024
    %v2239 = vunpack.c.l.b16 %v2025
    %v2240 = vunpack.c.h.b16 %v2025
    %v2241 = vpack.c.b16 %v2195, %v2193
    %v2242 = vpack.c.b16 %v2196, %v2194
    %v2243 = vpack.c.b16 %v2199, %v2197
    %v2244 = vpack.c.b16 %v2200, %v2198
    %v2245 = vpack.c.b16 %v2203, %v2201
    %v2246 = vpack.c.b16 %v2204, %v2202
    %v2247 = vpack.c.b16 %v2207, %v2205
    %v2248 = vpack.c.b16 %v2208, %v2206
    %v2249 = vpack.c.b16 %v2211, %v2209
    %v2250 = vpack.c.b16 %v2212, %v2210
    %v2251 = vpack.c.b16 %v2215, %v2213
    %v2252 = vpack.c.b16 %v2216, %v2214
    %v2253 = vpack.c.b16 %v2219, %v2217
    %v2254 = vpack.c.b16 %v2220, %v2218
    %v2255 = vpack.c.b16 %v2223, %v2221
    %v2256 = vpack.c.b16 %v2224, %v2222
    %v2257 = vpack.c.b16 %v2227, %v2225
    %v2258 = vpack.c.b16 %v2228, %v2226
    %v2259 = vpack.c.b16 %v2231, %v2229
    %v2260 = vpack.c.b16 %v2232, %v2230
    %v2261 = vpack.c.b16 %v2235, %v2233
    %v2262 = vpack.c.b16 %v2236, %v2234
    %v2263 = vpack.c.b16 %v2239, %v2237
    %v2264 = vpack.c.b16 %v2240, %v2238
    %v2290 = vsel %vm560, %v2043, 0
    %v2293 = vsel %vm560, %v2061, 0
    %v2296 = vsel %vm560, %v2079, 0
    %v2299 = vsel %vm560, %v2097, 0
    %v2302 = vsel %vm560, %v2115, 0
    %v2305 = vsel %vm560, %v2133, 0
    %v2308 = vsel %vm560, %v2151, 0
    %v2311 = vsel %vm560, %v2160, 0
    %2313 = vmatprep.subr.bf16.mxu0 %v2242
    %2314 = vmatpush1.bf16.msra.mxu0 %v2241
    %2315 = vmatprep.subr.bf16.mxu0 %v2244
    %2316 = vmatpush1.bf16.msra.mxu0 %v2243
    %2317 = vmatprep.subr.bf16.mxu0 %v2246
    %2318 = vmatpush1.bf16.msra.mxu0 %v2245
    %2319 = vmatprep.subr.bf16.mxu0 %v2248
    %2320 = vmatpush1.bf16.msra.mxu0 %v2247
    %2321 = vmatprep.subr.bf16.mxu0 %v2250
    %2322 = vmatpush1.bf16.msra.mxu0 %v2249
    %2323 = vmatprep.subr.bf16.mxu0 %v2252
    %2324 = vmatpush1.bf16.msra.mxu0 %v2251
    %2325 = vmatprep.subr.bf16.mxu0 %v2254
    %2326 = vmatpush1.bf16.msra.mxu0 %v2253
    %2327 = vmatprep.subr.bf16.mxu0 %v2256
    %2328 = vmatpush1.bf16.msra.mxu0 %v2255
    %2329 = vmatprep.subr.bf16.mxu0 %v2258
    %2330 = vmatpush1.bf16.msra.mxu0 %v2257
    %2331 = vmatprep.subr.bf16.mxu0 %v2260
    %2332 = vmatpush1.bf16.msra.mxu0 %v2259
    %2333 = vmatprep.subr.bf16.mxu0 %v2262
    %2334 = vmatpush1.bf16.msra.mxu0 %v2261
    %2335 = vmatprep.subr.bf16.mxu0 %v2264
    %2336 = vmatpush1.bf16.msra.mxu0 %v2263
    %2337 = vmatprep.subr.bf16.mxu0 0
    %2338 = vmatpush1.bf16.msra.mxu0 0
    %2339 = vmatprep.subr.bf16.mxu0 0
    %2340 = vmatpush1.bf16.msra.mxu0 0
    %2341 = vmatprep.subr.bf16.mxu0 0
    %2342 = vmatpush1.bf16.msra.mxu0 0
    %2343 = vmatprep.subr.bf16.mxu0 0
    %2344 = vmatpush1.bf16.msra.mxu0 0
    %2345 = vmatprep.mubr.bf16.mxu0 %v2290
    %2346 = vmatmul.mubr.bf16.gmra.mrb[0].mxu0 %v2042
    %v2347 = vpop.f32.mrb[0].mxu0
    %v2348 = vadd.f32 0.0, %v2347
    %v2349 = vpop.f32.mrb[0].mxu0
    %v2350 = vadd.f32 0.0, %v2349
    %v2351 = vpop.f32.mrb[0].mxu0
    %v2352 = vadd.f32 0.0, %v2351
    %v2353 = vpop.f32.mrb[0].mxu0
    %v2354 = vadd.f32 0.0, %v2353
    %2355 = vmatprep.mubr.bf16.mxu0 %v2293
    %2356 = vmatmul.mubr.bf16.gmra.mrb[0].mxu0 %v2060
    %v2357 = vpop.f32.mrb[0].mxu0
    %v2358 = vadd.f32 0.0, %v2357
    %v2359 = vpop.f32.mrb[0].mxu0
    %v2360 = vadd.f32 0.0, %v2359
    %v2361 = vpop.f32.mrb[0].mxu0
    %v2362 = vadd.f32 0.0, %v2361
    %v2363 = vpop.f32.mrb[0].mxu0
    %v2364 = vadd.f32 0.0, %v2363
    %2365 = vmatprep.mubr.bf16.mxu0 %v2296
    %2366 = vmatmul.mubr.bf16.gmra.mrb[0].mxu0 %v2078
    %v2367 = vpop.f32.mrb[0].mxu0
    %v2368 = vadd.f32 0.0, %v2367
    %v2369 = vpop.f32.mrb[0].mxu0
    %v2370 = vadd.f32 0.0, %v2369
    %v2371 = vpop.f32.mrb[0].mxu0
    %v2372 = vadd.f32 0.0, %v2371
    %v2373 = vpop.f32.mrb[0].mxu0
    %v2374 = vadd.f32 0.0, %v2373
    %2375 = vmatprep.mubr.bf16.mxu0 %v2299
    %2376 = vmatmul.mubr.bf16.gmra.mrb[0].mxu0 %v2096
    %v2377 = vpop.f32.mrb[0].mxu0
    %v2378 = vadd.f32 0.0, %v2377
    %v2379 = vpop.f32.mrb[0].mxu0
    %v2380 = vadd.f32 0.0, %v2379
    %v2381 = vpop.f32.mrb[0].mxu0
    %v2382 = vadd.f32 0.0, %v2381
    %v2383 = vpop.f32.mrb[0].mxu0
    %v2384 = vadd.f32 0.0, %v2383
    %2385 = vmatprep.mubr.bf16.mxu0 %v2302
    %2386 = vmatmul.mubr.bf16.gmra.mrb[0].mxu0 %v2114
    %v2387 = vpop.f32.mrb[0].mxu0
    %v2388 = vadd.f32 0.0, %v2387
    %v2389 = vpop.f32.mrb[0].mxu0
    %v2390 = vadd.f32 0.0, %v2389
    %v2391 = vpop.f32.mrb[0].mxu0
    %v2392 = vadd.f32 0.0, %v2391
    %v2393 = vpop.f32.mrb[0].mxu0
    %v2394 = vadd.f32 0.0, %v2393
    %2395 = vmatprep.mubr.bf16.mxu0 %v2305
    %2396 = vmatmul.mubr.bf16.gmra.mrb[0].mxu0 %v2132
    %v2397 = vpop.f32.mrb[0].mxu0
    %v2398 = vadd.f32 0.0, %v2397
    %v2399 = vpop.f32.mrb[0].mxu0
    %v2400 = vadd.f32 0.0, %v2399
    %v2401 = vpop.f32.mrb[0].mxu0
    %v2402 = vadd.f32 0.0, %v2401
    %v2403 = vpop.f32.mrb[0].mxu0
    %v2404 = vadd.f32 0.0, %v2403
    %2405 = vmatprep.mubr.bf16.mxu0 %v2308
    %2406 = vmatmul.mubr.bf16.gmra.mrb[0].mxu0 %v2150
    %v2407 = vpop.f32.mrb[0].mxu0
    %v2408 = vadd.f32 0.0, %v2407
    %v2409 = vpop.f32.mrb[0].mxu0
    %v2410 = vadd.f32 0.0, %v2409
    %v2411 = vpop.f32.mrb[0].mxu0
    %v2412 = vadd.f32 0.0, %v2411
    %v2413 = vpop.f32.mrb[0].mxu0
    %v2414 = vadd.f32 0.0, %v2413
    %2415 = vmatprep.mubr.bf16.mxu0 %v2311
    %2416 = vmatmul.mubr.bf16.gmra.mrb[0].mxu0 %v2159
    %v2417 = vpop.f32.mrb[0].mxu0
    %v2418 = vadd.f32 0.0, %v2417
    %v2419 = vpop.f32.mrb[0].mxu0
    %v2420 = vadd.f32 0.0, %v2419
    %v2421 = vpop.f32.mrb[0].mxu0
    %v2422 = vpop.f32.mrb[0].mxu0
    %2423 = vdwg.mxu0
    %v2424 = vld [vmem:[#allocation2] sm:$0xff]
    %v2425 = vld [vmem:[#allocation2 + $0x8] sm:$0xff]
    %v2426 = vld [vmem:[#allocation2 + $0x10] sm:$0xf]
    %v2427 = vld [vmem:[#allocation2 + $0x18] sm:$0xf]
    %v2428 = vld [vmem:[#allocation2 + $0x20] sm:$0xff]
    %v2429 = vld [vmem:[#allocation2 + $0x28] sm:$0xff]
    %v2430 = vld [vmem:[#allocation2 + $0x30] sm:$0xf]
    %v2431 = vld [vmem:[#allocation2 + $0x38] sm:$0xf]
    %v2432 = vld [vmem:[#allocation2 + $0x40] sm:$0xff]
    %v2433 = vld [vmem:[#allocation2 + $0x48] sm:$0xff]
    %v2434 = vld [vmem:[#allocation2 + $0x50] sm:$0xf]
    %v2435 = vld [vmem:[#allocation2 + $0x58] sm:$0xf]
    %v2436 = vld [vmem:[#allocation2 + $0x60] sm:$0xff]
    %v2437 = vld [vmem:[#allocation2 + $0x68] sm:$0xff]
    %v2438 = vld [vmem:[#allocation2 + $0x70] sm:$0xf]
    %v2439 = vld [vmem:[#allocation2 + $0x78] sm:$0xf]
    %v2440 = vld [vmem:[#allocation2 + $0x80] sm:$0xff]
    %v2441 = vld [vmem:[#allocation2 + $0x88] sm:$0xff]
    %v2442 = vld [vmem:[#allocation2 + $0x90] sm:$0xf]
    %v2443 = vld [vmem:[#allocation2 + $0x98] sm:$0xf]
    %v2444 = vld [vmem:[#allocation2 + $0xa0] sm:$0xff]
    %v2445 = vld [vmem:[#allocation2 + $0xa8] sm:$0xff]
    %v2446 = vld [vmem:[#allocation2 + $0xb0] sm:$0xf]
    %v2447 = vld [vmem:[#allocation2 + $0xb8] sm:$0xf]
    %v2448 = vld [vmem:[#allocation2 + $0xc0] sm:$0xff]
    %v2449 = vld [vmem:[#allocation2 + $0xc8] sm:$0xff]
    %v2450 = vld [vmem:[#allocation2 + $0xd0] sm:$0xf]
    %v2451 = vld [vmem:[#allocation2 + $0xd8] sm:$0xf]
    %v2452 = vld [vmem:[#allocation2 + $0xe0] sm:$0xff]
    %v2453 = vld [vmem:[#allocation2 + $0xe8] sm:$0xff]
    %v2454 = vld [vmem:[#allocation2 + $0xf0] sm:$0xf]
    %v2455 = vld [vmem:[#allocation2 + $0xf8] sm:$0xf]
    %v2456 = vld [vmem:[#allocation2 + $0x100] sm:$0xff]
    %v2457 = vld [vmem:[#allocation2 + $0x108] sm:$0xff]
    %v2458 = vld [vmem:[#allocation2 + $0x110] sm:$0xf]
    %v2459 = vld [vmem:[#allocation2 + $0x118] sm:$0xf]
    %v2460 = vld [vmem:[#allocation2 + $0x120] sm:$0xff]
    %v2461 = vld [vmem:[#allocation2 + $0x128] sm:$0xff]
    %v2462 = vld [vmem:[#allocation2 + $0x130] sm:$0xf]
    %v2463 = vld [vmem:[#allocation2 + $0x138] sm:$0xf]
    %v2494 = vcombine.low %v2348, %v2350
    %v2495 = vcombine.high %v2348, %v2350
    %v2496 = vcombine.low %v2352, %v2354
    %v2497 = vcombine.high %v2352, %v2354
    %v2498 = vcombine.low %v2358, %v2360
    %v2499 = vcombine.high %v2358, %v2360
    %v2500 = vcombine.low %v2362, %v2364
    %v2501 = vcombine.high %v2362, %v2364
    %v2502 = vcombine.low %v2368, %v2370
    %v2503 = vcombine.high %v2368, %v2370
    %v2504 = vcombine.low %v2372, %v2374
    %v2505 = vcombine.high %v2372, %v2374
    %v2506 = vcombine.low %v2378, %v2380
    %v2507 = vcombine.high %v2378, %v2380
    %v2508 = vcombine.low %v2382, %v2384
    %v2509 = vcombine.high %v2382, %v2384
    %v2510 = vcombine.low %v2388, %v2390
    %v2511 = vcombine.high %v2388, %v2390
    %v2512 = vcombine.low %v2392, %v2394
    %v2513 = vcombine.high %v2392, %v2394
    %v2514 = vcombine.low %v2398, %v2400
    %v2515 = vcombine.high %v2398, %v2400
    %v2516 = vcombine.low %v2402, %v2404
    %v2517 = vcombine.high %v2402, %v2404
    %v2518 = vcombine.low %v2408, %v2410
    %v2519 = vcombine.high %v2408, %v2410
    %v2520 = vcombine.low %v2412, %v2414
    %v2521 = vcombine.high %v2412, %v2414
    %v2522 = vcombine.low %v2418, %v2420
    %v2523 = vcombine.high %v2418, %v2420
    %v2534 = vcombine.low %v2494, %v2495
    %v2535 = vcombine.high %v2494, %v2495
    %v2536 = vcombine.high %v2496, %v2496
    %v2537 = vcombine.low %v2497, %v2498
    %v2538 = vcombine.high %v2497, %v2498
    %v2539 = vcombine.high %v2499, %v2499
    %v2540 = vcombine.low %v2500, %v2501
    %v2541 = vcombine.high %v2500, %v2501
    %v2542 = vcombine.high %v2502, %v2502
    %v2543 = vcombine.low %v2503, %v2504
    %v2544 = vcombine.high %v2503, %v2504
    %v2545 = vcombine.high %v2505, %v2505
    %v2546 = vcombine.low %v2506, %v2507
    %v2547 = vcombine.high %v2506, %v2507
    %v2548 = vcombine.high %v2508, %v2508
    %v2549 = vcombine.low %v2509, %v2510
    %v2550 = vcombine.high %v2509, %v2510
    %v2551 = vcombine.high %v2511, %v2511
    %v2552 = vcombine.low %v2512, %v2513
    %v2553 = vcombine.high %v2512, %v2513
    %v2554 = vcombine.high %v2514, %v2514
    %v2555 = vcombine.low %v2515, %v2516
    %v2556 = vcombine.high %v2515, %v2516
    %v2557 = vcombine.high %v2517, %v2517
    %v2558 = vcombine.low %v2518, %v2519
    %v2559 = vcombine.high %v2518, %v2519
    %v2560 = vcombine.high %v2520, %v2520
    %v2561 = vcombine.low %v2521, %v2522
    %v2562 = vcombine.high %v2521, %v2522
    %v2563 = vcombine.high %v2523, %v2523
    %v2594 = vadd.f32 %v2424, %v2534
    %v2595 = vadd.f32 %v2425, %v2535
    %v2596 = vadd.f32 %v2426, %v2496
    %v2597 = vadd.f32 %v2427, %v2536
    %v2598 = vadd.f32 %v2428, %v2537
    %v2599 = vadd.f32 %v2429, %v2538
    %v2600 = vadd.f32 %v2430, %v2499
    %v2601 = vadd.f32 %v2431, %v2539
    %v2602 = vadd.f32 %v2432, %v2540
    %v2603 = vadd.f32 %v2433, %v2541
    %v2604 = vadd.f32 %v2434, %v2502
    %v2605 = vadd.f32 %v2435, %v2542
    %v2606 = vadd.f32 %v2436, %v2543
    %v2607 = vadd.f32 %v2437, %v2544
    %v2608 = vadd.f32 %v2438, %v2505
    %v2609 = vadd.f32 %v2439, %v2545
    %v2610 = vadd.f32 %v2440, %v2546
    %v2611 = vadd.f32 %v2441, %v2547
    %v2612 = vadd.f32 %v2442, %v2508
    %v2613 = vadd.f32 %v2443, %v2548
    %v2614 = vadd.f32 %v2444, %v2549
    %v2615 = vadd.f32 %v2445, %v2550
    %v2616 = vadd.f32 %v2446, %v2511
    %v2617 = vadd.f32 %v2447, %v2551
    %v2618 = vadd.f32 %v2448, %v2552
    %v2619 = vadd.f32 %v2449, %v2553
    %v2620 = vadd.f32 %v2450, %v2514
    %v2621 = vadd.f32 %v2451, %v2554
    %v2622 = vadd.f32 %v2452, %v2555
    %v2623 = vadd.f32 %v2453, %v2556
    %v2624 = vadd.f32 %v2454, %v2517
    %v2625 = vadd.f32 %v2455, %v2557
    %v2626 = vadd.f32 %v2456, %v2558
    %v2627 = vadd.f32 %v2457, %v2559
    %v2628 = vadd.f32 %v2458, %v2520
    %v2629 = vadd.f32 %v2459, %v2560
    %v2630 = vadd.f32 %v2460, %v2561
    %v2631 = vadd.f32 %v2461, %v2562
    %v2632 = vadd.f32 %v2462, %v2523
    %v2633 = vadd.f32 %v2463, %v2563
    %2634 = vst [vmem:[#allocation2] sm:$0xff] %v2594
    %2635 = vst.msk [vmem:[#allocation2 + $0x8] sm:$0xff] %vm42, %v2595
    %2636 = vst [vmem:[#allocation2 + $0x10] sm:$0xf] %v2596
    %2637 = vst.msk [vmem:[#allocation2 + $0x18] sm:$0xf] %vm45, %v2597
    %2638 = vst [vmem:[#allocation2 + $0x20] sm:$0xff] %v2598
    %2639 = vst.msk [vmem:[#allocation2 + $0x28] sm:$0xff] %vm42, %v2599
    %2640 = vst [vmem:[#allocation2 + $0x30] sm:$0xf] %v2600
    %2641 = vst.msk [vmem:[#allocation2 + $0x38] sm:$0xf] %vm45, %v2601
    %2642 = vst [vmem:[#allocation2 + $0x40] sm:$0xff] %v2602
    %2643 = vst.msk [vmem:[#allocation2 + $0x48] sm:$0xff] %vm42, %v2603
    %2644 = vst [vmem:[#allocation2 + $0x50] sm:$0xf] %v2604
    %2645 = vst.msk [vmem:[#allocation2 + $0x58] sm:$0xf] %vm45, %v2605
    %2646 = vst [vmem:[#allocation2 + $0x60] sm:$0xff] %v2606
    %2647 = vst.msk [vmem:[#allocation2 + $0x68] sm:$0xff] %vm42, %v2607
    %2648 = vst [vmem:[#allocation2 + $0x70] sm:$0xf] %v2608
    %2649 = vst.msk [vmem:[#allocation2 + $0x78] sm:$0xf] %vm45, %v2609
    %2650 = vst [vmem:[#allocation2 + $0x80] sm:$0xff] %v2610
    %2651 = vst.msk [vmem:[#allocation2 + $0x88] sm:$0xff] %vm42, %v2611
    %2652 = vst [vmem:[#allocation2 + $0x90] sm:$0xf] %v2612
    %2653 = vst.msk [vmem:[#allocation2 + $0x98] sm:$0xf] %vm45, %v2613
    %2654 = vst [vmem:[#allocation2 + $0xa0] sm:$0xff] %v2614
    %2655 = vst.msk [vmem:[#allocation2 + $0xa8] sm:$0xff] %vm42, %v2615
    %2656 = vst [vmem:[#allocation2 + $0xb0] sm:$0xf] %v2616
    %2657 = vst.msk [vmem:[#allocation2 + $0xb8] sm:$0xf] %vm45, %v2617
    %2658 = vst [vmem:[#allocation2 + $0xc0] sm:$0xff] %v2618
    %2659 = vst.msk [vmem:[#allocation2 + $0xc8] sm:$0xff] %vm42, %v2619
    %2660 = vst [vmem:[#allocation2 + $0xd0] sm:$0xf] %v2620
    %2661 = vst.msk [vmem:[#allocation2 + $0xd8] sm:$0xf] %vm45, %v2621
    %2662 = vst [vmem:[#allocation2 + $0xe0] sm:$0xff] %v2622
    %2663 = vst.msk [vmem:[#allocation2 + $0xe8] sm:$0xff] %vm42, %v2623
    %2664 = vst [vmem:[#allocation2 + $0xf0] sm:$0xf] %v2624
    %2665 = vst.msk [vmem:[#allocation2 + $0xf8] sm:$0xf] %vm45, %v2625
    %2666 = vst [vmem:[#allocation2 + $0x100] sm:$0xff] %v2626
    %2667 = vst.msk [vmem:[#allocation2 + $0x108] sm:$0xff] %vm42, %v2627
    %2668 = vst [vmem:[#allocation2 + $0x110] sm:$0xf] %v2628
    %2669 = vst.msk [vmem:[#allocation2 + $0x118] sm:$0xf] %vm45, %v2629
    %2670 = vst [vmem:[#allocation2 + $0x120] sm:$0xff] %v2630
    %2671 = vst.msk [vmem:[#allocation2 + $0x128] sm:$0xff] %vm42, %v2631
    %2672 = vst [vmem:[#allocation2 + $0x130] sm:$0xf] %v2632
    %2673 = vst.msk [vmem:[#allocation2 + $0x138] sm:$0xf] %vm45, %v2633
    %v2674 = vld [vmem:[#allocation2] sm:$0xff]
    %v2675 = vld [vmem:[#allocation2 + $0x10] sm:$0x3]
    %v2676 = vld [vmem:[#allocation2 + $0x20] sm:$0xff]
    %v2677 = vld [vmem:[#allocation2 + $0x30] sm:$0x3]
    %v2678 = vld [vmem:[#allocation2 + $0x40] sm:$0xff]
    %v2679 = vld [vmem:[#allocation2 + $0x50] sm:$0x3]
    %v2680 = vld [vmem:[#allocation2 + $0x60] sm:$0xff]
    %v2681 = vld [vmem:[#allocation2 + $0x70] sm:$0x3]
    %v2682 = vld [vmem:[#allocation2 + $0x80] sm:$0xff]
    %v2683 = vld [vmem:[#allocation2 + $0x90] sm:$0x3]
    %v2684 = vld [vmem:[#allocation2 + $0xa0] sm:$0xff]
    %v2685 = vld [vmem:[#allocation2 + $0xb0] sm:$0x3]
    %v2686 = vld [vmem:[#allocation2 + $0xc0] sm:$0xff]
    %v2687 = vld [vmem:[#allocation2 + $0xd0] sm:$0x3]
    %v2688 = vld [vmem:[#allocation2 + $0xe0] sm:$0xff]
    %v2689 = vld [vmem:[#allocation2 + $0xf0] sm:$0x3]
    %v2690 = vld [vmem:[#allocation2 + $0x100] sm:$0xff]
    %v2691 = vld [vmem:[#allocation2 + $0x110] sm:$0x3]
    %v2692 = vld [vmem:[#allocation2 + $0x120] sm:$0xff]
    %v2693 = vld [vmem:[#allocation2 + $0x130] sm:$0x3]
    %v2694 = vld [vmem:[#allocation2] sm:$0xfe]
    %v2695 = vld [vmem:[#allocation2 + $0x10] sm:$0x7]
    %v2696 = vld [vmem:[#allocation2 + $0x20] sm:$0xfe]
    %v2697 = vld [vmem:[#allocation2 + $0x30] sm:$0x7]
    %v2698 = vld [vmem:[#allocation2 + $0x40] sm:$0xfe]
    %v2699 = vld [vmem:[#allocation2 + $0x50] sm:$0x7]
    %v2700 = vld [vmem:[#allocation2 + $0x60] sm:$0xfe]
    %v2701 = vld [vmem:[#allocation2 + $0x70] sm:$0x7]
    %v2702 = vld [vmem:[#allocation2 + $0x80] sm:$0xfe]
    %v2703 = vld [vmem:[#allocation2 + $0x90] sm:$0x7]
    %v2704 = vld [vmem:[#allocation2 + $0xa0] sm:$0xfe]
    %v2705 = vld [vmem:[#allocation2 + $0xb0] sm:$0x7]
    %v2706 = vld [vmem:[#allocation2 + $0xc0] sm:$0xfe]
    %v2707 = vld [vmem:[#allocation2 + $0xd0] sm:$0x7]
    %v2708 = vld [vmem:[#allocation2 + $0xe0] sm:$0xfe]
    %v2709 = vld [vmem:[#allocation2 + $0xf0] sm:$0x7]
    %v2710 = vld [vmem:[#allocation2 + $0x100] sm:$0xfe]
    %v2711 = vld [vmem:[#allocation2 + $0x110] sm:$0x7]
    %v2712 = vld [vmem:[#allocation2 + $0x120] sm:$0xfe]
    %v2713 = vld [vmem:[#allocation2 + $0x130] sm:$0x7]
    %vm2734 = vcmask 1046528
    %v2735 = vrot.slane %v2694, 1
    %v2736 = vrot.slane %v2695, 1
    %v2737 = vsel %vm2734, %v2735, %v2736
    %v2738 = vrot.slane %v2696, 1
    %v2739 = vrot.slane %v2697, 1
    %v2740 = vsel %vm2734, %v2738, %v2739
    %v2741 = vrot.slane %v2698, 1
    %v2742 = vrot.slane %v2699, 1
    %v2743 = vsel %vm2734, %v2741, %v2742
    %v2744 = vrot.slane %v2700, 1
    %v2745 = vrot.slane %v2701, 1
    %v2746 = vsel %vm2734, %v2744, %v2745
    %v2747 = vrot.slane %v2702, 1
    %v2748 = vrot.slane %v2703, 1
    %v2749 = vsel %vm2734, %v2747, %v2748
    %v2750 = vrot.slane %v2704, 1
    %v2751 = vrot.slane %v2705, 1
    %v2752 = vsel %vm2734, %v2750, %v2751
    %v2753 = vrot.slane %v2706, 1
    %v2754 = vrot.slane %v2707, 1
    %v2755 = vsel %vm2734, %v2753, %v2754
    %v2756 = vrot.slane %v2708, 1
    %v2757 = vrot.slane %v2709, 1
    %v2758 = vsel %vm2734, %v2756, %v2757
    %v2759 = vrot.slane %v2710, 1
    %v2760 = vrot.slane %v2711, 1
    %v2761 = vsel %vm2734, %v2759, %v2760
    %v2762 = vrot.slane %v2712, 1
    %v2763 = vrot.slane %v2713, 1
    %v2764 = vsel %vm2734, %v2762, %v2763
    %2765 = vrot.lane.b32.xlu0 %v2737, 80
    %v2766 = vpop.permute.xlu0 %2765
    %2767 = vrot.lane.b32.xlu0 %v2736, 80
    %v2768 = vpop.permute.xlu0 %2767
    %2769 = vrot.lane.b32.xlu0 %v2740, 80
    %v2770 = vpop.permute.xlu0 %2769
    %2771 = vrot.lane.b32.xlu0 %v2739, 80
    %v2772 = vpop.permute.xlu0 %2771
    %2773 = vrot.lane.b32.xlu0 %v2743, 80
    %v2774 = vpop.permute.xlu0 %2773
    %2775 = vrot.lane.b32.xlu0 %v2742, 80
    %v2776 = vpop.permute.xlu0 %2775
    %2777 = vrot.lane.b32.xlu0 %v2746, 80
    %v2778 = vpop.permute.xlu0 %2777
    %2779 = vrot.lane.b32.xlu0 %v2745, 80
    %v2780 = vpop.permute.xlu0 %2779
    %2781 = vrot.lane.b32.xlu0 %v2749, 80
    %v2782 = vpop.permute.xlu0 %2781
    %2783 = vrot.lane.b32.xlu0 %v2748, 80
    %v2784 = vpop.permute.xlu0 %2783
    %2785 = vrot.lane.b32.xlu0 %v2752, 80
    %v2786 = vpop.permute.xlu0 %2785
    %2787 = vrot.lane.b32.xlu0 %v2751, 80
    %v2788 = vpop.permute.xlu0 %2787
    %2789 = vrot.lane.b32.xlu0 %v2755, 80
    %v2790 = vpop.permute.xlu0 %2789
    %2791 = vrot.lane.b32.xlu0 %v2754, 80
    %v2792 = vpop.permute.xlu0 %2791
    %2793 = vrot.lane.b32.xlu0 %v2758, 80
    %v2794 = vpop.permute.xlu0 %2793
    %2795 = vrot.lane.b32.xlu0 %v2757, 80
    %v2796 = vpop.permute.xlu0 %2795
    %2797 = vrot.lane.b32.xlu0 %v2761, 80
    %v2798 = vpop.permute.xlu0 %2797
    %2799 = vrot.lane.b32.xlu0 %v2760, 80
    %v2800 = vpop.permute.xlu0 %2799
    %2801 = vrot.lane.b32.xlu0 %v2764, 80
    %v2802 = vpop.permute.xlu0 %2801
    %2803 = vrot.lane.b32.xlu0 %v2763, 80
    %v2804 = vpop.permute.xlu0 %2803
    %v2825 = vadd.f32 %v2674, %v2766
    %v2826 = vadd.f32 %v2675, %v2768
    %v2827 = vadd.f32 %v2676, %v2770
    %v2828 = vadd.f32 %v2677, %v2772
    %v2829 = vadd.f32 %v2678, %v2774
    %v2830 = vadd.f32 %v2679, %v2776
    %v2831 = vadd.f32 %v2680, %v2778
    %v2832 = vadd.f32 %v2681, %v2780
    %v2833 = vadd.f32 %v2682, %v2782
    %v2834 = vadd.f32 %v2683, %v2784
    %v2835 = vadd.f32 %v2684, %v2786
    %v2836 = vadd.f32 %v2685, %v2788
    %v2837 = vadd.f32 %v2686, %v2790
    %v2838 = vadd.f32 %v2687, %v2792
    %v2839 = vadd.f32 %v2688, %v2794
    %v2840 = vadd.f32 %v2689, %v2796
    %v2841 = vadd.f32 %v2690, %v2798
    %v2842 = vadd.f32 %v2691, %v2800
    %v2843 = vadd.f32 %v2692, %v2802
    %v2844 = vadd.f32 %v2693, %v2804
    %v2845 = vld [vmem:[#allocation2] sm:$0xfc]
    %v2846 = vld [vmem:[#allocation2 + $0x8] sm:$0xfc]
    %v2847 = vld [vmem:[#allocation2 + $0x10] sm:$0xf]
    %v2848 = vld [vmem:[#allocation2 + $0x18] sm:$0xf]
    %v2849 = vld [vmem:[#allocation2 + $0x20] sm:$0xfc]
    %v2850 = vld [vmem:[#allocation2 + $0x28] sm:$0xfc]
    %v2851 = vld [vmem:[#allocation2 + $0x30] sm:$0xf]
    %v2852 = vld [vmem:[#allocation2 + $0x38] sm:$0xf]
    %v2853 = vld [vmem:[#allocation2 + $0x40] sm:$0xfc]
    %v2854 = vld [vmem:[#allocation2 + $0x48] sm:$0xfc]
    %v2855 = vld [vmem:[#allocation2 + $0x50] sm:$0xf]
    %v2856 = vld [vmem:[#allocation2 + $0x58] sm:$0xf]
    %v2857 = vld [vmem:[#allocation2 + $0x60] sm:$0xfc]
    %v2858 = vld [vmem:[#allocation2 + $0x68] sm:$0xfc]
    %v2859 = vld [vmem:[#allocation2 + $0x70] sm:$0xf]
    %v2860 = vld [vmem:[#allocation2 + $0x78] sm:$0xf]
    %v2861 = vld [vmem:[#allocation2 + $0x80] sm:$0xfc]
    %v2862 = vld [vmem:[#allocation2 + $0x88] sm:$0xfc]
    %v2863 = vld [vmem:[#allocation2 + $0x90] sm:$0xf]
    %v2864 = vld [vmem:[#allocation2 + $0x98] sm:$0xf]
    %v2865 = vld [vmem:[#allocation2 + $0xa0] sm:$0xfc]
    %v2866 = vld [vmem:[#allocation2 + $0xa8] sm:$0xfc]
    %v2867 = vld [vmem:[#allocation2 + $0xb0] sm:$0xf]
    %v2868 = vld [vmem:[#allocation2 + $0xb8] sm:$0xf]
    %v2869 = vld [vmem:[#allocation2 + $0xc0] sm:$0xfc]
    %v2870 = vld [vmem:[#allocation2 + $0xc8] sm:$0xfc]
    %v2871 = vld [vmem:[#allocation2 + $0xd0] sm:$0xf]
    %v2872 = vld [vmem:[#allocation2 + $0xd8] sm:$0xf]
    %v2873 = vld [vmem:[#allocation2 + $0xe0] sm:$0xfc]
    %v2874 = vld [vmem:[#allocation2 + $0xe8] sm:$0xfc]
    %v2875 = vld [vmem:[#allocation2 + $0xf0] sm:$0xf]
    %v2876 = vld [vmem:[#allocation2 + $0xf8] sm:$0xf]
    %v2877 = vld [vmem:[#allocation2 + $0x100] sm:$0xfc]
    %v2878 = vld [vmem:[#allocation2 + $0x108] sm:$0xfc]
    %v2879 = vld [vmem:[#allocation2 + $0x110] sm:$0xf]
    %v2880 = vld [vmem:[#allocation2 + $0x118] sm:$0xf]
    %v2881 = vld [vmem:[#allocation2 + $0x120] sm:$0xfc]
    %v2882 = vld [vmem:[#allocation2 + $0x128] sm:$0xfc]
    %v2883 = vld [vmem:[#allocation2 + $0x130] sm:$0xf]
    %v2884 = vld [vmem:[#allocation2 + $0x138] sm:$0xf]
    %vm2925 = vcmask 1045504
    %v2926 = vrot.slane %v2845, 2
    %v2927 = vrot.slane %v2847, 2
    %v2928 = vsel %vm2925, %v2926, %v2927
    %v2929 = vrot.slane %v2846, 2
    %v2930 = vrot.slane %v2848, 2
    %v2931 = vsel %vm2925, %v2929, %v2930
    %v2932 = vrot.slane %v2849, 2
    %v2933 = vrot.slane %v2851, 2
    %v2934 = vsel %vm2925, %v2932, %v2933
    %v2935 = vrot.slane %v2850, 2
    %v2936 = vrot.slane %v2852, 2
    %v2937 = vsel %vm2925, %v2935, %v2936
    %v2938 = vrot.slane %v2853, 2
    %v2939 = vrot.slane %v2855, 2
    %v2940 = vsel %vm2925, %v2938, %v2939
    %v2941 = vrot.slane %v2854, 2
    %v2942 = vrot.slane %v2856, 2
    %v2943 = vsel %vm2925, %v2941, %v2942
    %v2944 = vrot.slane %v2857, 2
    %v2945 = vrot.slane %v2859, 2
    %v2946 = vsel %vm2925, %v2944, %v2945
    %v2947 = vrot.slane %v2858, 2
    %v2948 = vrot.slane %v2860, 2
    %v2949 = vsel %vm2925, %v2947, %v2948
    %v2950 = vrot.slane %v2861, 2
    %v2951 = vrot.slane %v2863, 2
    %v2952 = vsel %vm2925, %v2950, %v2951
    %v2953 = vrot.slane %v2862, 2
    %v2954 = vrot.slane %v2864, 2
    %v2955 = vsel %vm2925, %v2953, %v2954
    %v2956 = vrot.slane %v2865, 2
    %v2957 = vrot.slane %v2867, 2
    %v2958 = vsel %vm2925, %v2956, %v2957
    %v2959 = vrot.slane %v2866, 2
    %v2960 = vrot.slane %v2868, 2
    %v2961 = vsel %vm2925, %v2959, %v2960
    %v2962 = vrot.slane %v2869, 2
    %v2963 = vrot.slane %v2871, 2
    %v2964 = vsel %vm2925, %v2962, %v2963
    %v2965 = vrot.slane %v2870, 2
    %v2966 = vrot.slane %v2872, 2
    %v2967 = vsel %vm2925, %v2965, %v2966
    %v2968 = vrot.slane %v2873, 2
    %v2969 = vrot.slane %v2875, 2
    %v2970 = vsel %vm2925, %v2968, %v2969
    %v2971 = vrot.slane %v2874, 2
    %v2972 = vrot.slane %v2876, 2
    %v2973 = vsel %vm2925, %v2971, %v2972
    %v2974 = vrot.slane %v2877, 2
    %v2975 = vrot.slane %v2879, 2
    %v2976 = vsel %vm2925, %v2974, %v2975
    %v2977 = vrot.slane %v2878, 2
    %v2978 = vrot.slane %v2880, 2
    %v2979 = vsel %vm2925, %v2977, %v2978
    %v2980 = vrot.slane %v2881, 2
    %v2981 = vrot.slane %v2883, 2
    %v2982 = vsel %vm2925, %v2980, %v2981
    %v2983 = vrot.slane %v2882, 2
    %v2984 = vrot.slane %v2884, 2
    %v2985 = vsel %vm2925, %v2983, %v2984
    %2986 = vrot.lane.b32.xlu0 %v2928, 32
    %v2987 = vpop.permute.xlu0 %2986
    %2988 = vrot.lane.b32.xlu0 %v2931, 32
    %v2989 = vpop.permute.xlu0 %2988
    %2990 = vrot.lane.b32.xlu0 %v2927, 32
    %v2991 = vpop.permute.xlu0 %2990
    %2992 = vrot.lane.b32.xlu0 %v2930, 32
    %v2993 = vpop.permute.xlu0 %2992
    %2994 = vrot.lane.b32.xlu0 %v2934, 32
    %v2995 = vpop.permute.xlu0 %2994
    %2996 = vrot.lane.b32.xlu0 %v2937, 32
    %v2997 = vpop.permute.xlu0 %2996
    %2998 = vrot.lane.b32.xlu0 %v2933, 32
    %v2999 = vpop.permute.xlu0 %2998
    %3000 = vrot.lane.b32.xlu0 %v2936, 32
    %v3001 = vpop.permute.xlu0 %3000
    %3002 = vrot.lane.b32.xlu0 %v2940, 32
    %v3003 = vpop.permute.xlu0 %3002
    %3004 = vrot.lane.b32.xlu0 %v2943, 32
    %v3005 = vpop.permute.xlu0 %3004
    %3006 = vrot.lane.b32.xlu0 %v2939, 32
    %v3007 = vpop.permute.xlu0 %3006
    %3008 = vrot.lane.b32.xlu0 %v2942, 32
    %v3009 = vpop.permute.xlu0 %3008
    %3010 = vrot.lane.b32.xlu0 %v2946, 32
    %v3011 = vpop.permute.xlu0 %3010
    %3012 = vrot.lane.b32.xlu0 %v2949, 32
    %v3013 = vpop.permute.xlu0 %3012
    %3014 = vrot.lane.b32.xlu0 %v2945, 32
    %v3015 = vpop.permute.xlu0 %3014
    %3016 = vrot.lane.b32.xlu0 %v2948, 32
    %v3017 = vpop.permute.xlu0 %3016
    %3018 = vrot.lane.b32.xlu0 %v2952, 32
    %v3019 = vpop.permute.xlu0 %3018
    %3020 = vrot.lane.b32.xlu0 %v2955, 32
    %v3021 = vpop.permute.xlu0 %3020
    %3022 = vrot.lane.b32.xlu0 %v2951, 32
    %v3023 = vpop.permute.xlu0 %3022
    %3024 = vrot.lane.b32.xlu0 %v2954, 32
    %v3025 = vpop.permute.xlu0 %3024
    %3026 = vrot.lane.b32.xlu0 %v2958, 32
    %v3027 = vpop.permute.xlu0 %3026
    %3028 = vrot.lane.b32.xlu0 %v2961, 32
    %v3029 = vpop.permute.xlu0 %3028
    %3030 = vrot.lane.b32.xlu0 %v2957, 32
    %v3031 = vpop.permute.xlu0 %3030
    %3032 = vrot.lane.b32.xlu0 %v2960, 32
    %v3033 = vpop.permute.xlu0 %3032
    %3034 = vrot.lane.b32.xlu0 %v2964, 32
    %v3035 = vpop.permute.xlu0 %3034
    %3036 = vrot.lane.b32.xlu0 %v2967, 32
    %v3037 = vpop.permute.xlu0 %3036
    %3038 = vrot.lane.b32.xlu0 %v2963, 32
    %v3039 = vpop.permute.xlu0 %3038
    %3040 = vrot.lane.b32.xlu0 %v2966, 32
    %v3041 = vpop.permute.xlu0 %3040
    %3042 = vrot.lane.b32.xlu0 %v2970, 32
    %v3043 = vpop.permute.xlu0 %3042
    %3044 = vrot.lane.b32.xlu0 %v2973, 32
    %v3045 = vpop.permute.xlu0 %3044
    %3046 = vrot.lane.b32.xlu0 %v2969, 32
    %v3047 = vpop.permute.xlu0 %3046
    %3048 = vrot.lane.b32.xlu0 %v2972, 32
    %v3049 = vpop.permute.xlu0 %3048
    %3050 = vrot.lane.b32.xlu0 %v2976, 32
    %v3051 = vpop.permute.xlu0 %3050
    %3052 = vrot.lane.b32.xlu0 %v2979, 32
    %v3053 = vpop.permute.xlu0 %3052
    %3054 = vrot.lane.b32.xlu0 %v2975, 32
    %v3055 = vpop.permute.xlu0 %3054
    %3056 = vrot.lane.b32.xlu0 %v2978, 32
    %v3057 = vpop.permute.xlu0 %3056
    %3058 = vrot.lane.b32.xlu0 %v2982, 32
    %v3059 = vpop.permute.xlu0 %3058
    %3060 = vrot.lane.b32.xlu0 %v2985, 32
    %v3061 = vpop.permute.xlu0 %3060
    %3062 = vrot.lane.b32.xlu0 %v2981, 32
    %v3063 = vpop.permute.xlu0 %3062
    %3064 = vrot.lane.b32.xlu0 %v2984, 32
    %v3065 = vpop.permute.xlu0 %3064
    %vm3066 = vcmask 261120
    %v3067 = vsel %vm3066, %v2987, %v2989
    %v3068 = vsel %vm3066, %v2991, %v2993
    %v3069 = vsel %vm3066, %v2995, %v2997
    %v3070 = vsel %vm3066, %v2999, %v3001
    %v3071 = vsel %vm3066, %v3003, %v3005
    %v3072 = vsel %vm3066, %v3007, %v3009
    %v3073 = vsel %vm3066, %v3011, %v3013
    %v3074 = vsel %vm3066, %v3015, %v3017
    %v3075 = vsel %vm3066, %v3019, %v3021
    %v3076 = vsel %vm3066, %v3023, %v3025
    %v3077 = vsel %vm3066, %v3027, %v3029
    %v3078 = vsel %vm3066, %v3031, %v3033
    %v3079 = vsel %vm3066, %v3035, %v3037
    %v3080 = vsel %vm3066, %v3039, %v3041
    %v3081 = vsel %vm3066, %v3043, %v3045
    %v3082 = vsel %vm3066, %v3047, %v3049
    %v3083 = vsel %vm3066, %v3051, %v3053
    %v3084 = vsel %vm3066, %v3055, %v3057
    %v3085 = vsel %vm3066, %v3059, %v3061
    %v3086 = vsel %vm3066, %v3063, %v3065
    %v3107 = vadd.f32 %v2825, %v3067
    %v3108 = vadd.f32 %v2826, %v3068
    %v3109 = vadd.f32 %v2827, %v3069
    %v3110 = vadd.f32 %v2828, %v3070
    %v3111 = vadd.f32 %v2829, %v3071
    %v3112 = vadd.f32 %v2830, %v3072
    %v3113 = vadd.f32 %v2831, %v3073
    %v3114 = vadd.f32 %v2832, %v3074
    %v3115 = vadd.f32 %v2833, %v3075
    %v3116 = vadd.f32 %v2834, %v3076
    %v3117 = vadd.f32 %v2835, %v3077
    %v3118 = vadd.f32 %v2836, %v3078
    %v3119 = vadd.f32 %v2837, %v3079
    %v3120 = vadd.f32 %v2838, %v3080
    %v3121 = vadd.f32 %v2839, %v3081
    %v3122 = vadd.f32 %v2840, %v3082
    %v3123 = vadd.f32 %v2841, %v3083
    %v3124 = vadd.f32 %v2842, %v3084
    %v3125 = vadd.f32 %v2843, %v3085
    %v3126 = vadd.f32 %v2844, %v3086
    %v3127 = vpack.c.bf16 %v3108, %v3107
    %v3128 = vpack.c.bf16 %v3110, %v3109
    %v3129 = vpack.c.bf16 %v3112, %v3111
    %v3130 = vpack.c.bf16 %v3114, %v3113
    %v3131 = vpack.c.bf16 %v3116, %v3115
    %v3132 = vpack.c.bf16 %v3118, %v3117
    %v3133 = vpack.c.bf16 %v3120, %v3119
    %v3134 = vpack.c.bf16 %v3122, %v3121
    %v3135 = vpack.c.bf16 %v3124, %v3123
    %v3136 = vpack.c.bf16 %v3126, %v3125
    %v3147 = vunpack.c.l.b16 %v3127
    %v3148 = vunpack.c.h.b16 %v3127
    %v3149 = vunpack.c.l.b16 %v3128
    %v3150 = vunpack.c.h.b16 %v3128
    %v3151 = vunpack.c.l.b16 %v3129
    %v3152 = vunpack.c.h.b16 %v3129
    %v3153 = vunpack.c.l.b16 %v3130
    %v3154 = vunpack.c.h.b16 %v3130
    %v3155 = vunpack.c.l.b16 %v3131
    %v3156 = vunpack.c.h.b16 %v3131
    %v3157 = vunpack.c.l.b16 %v3132
    %v3158 = vunpack.c.h.b16 %v3132
    %v3159 = vunpack.c.l.b16 %v3133
    %v3160 = vunpack.c.h.b16 %v3133
    %v3161 = vunpack.c.l.b16 %v3134
    %v3162 = vunpack.c.h.b16 %v3134
    %v3163 = vunpack.c.l.b16 %v3135
    %v3164 = vunpack.c.h.b16 %v3135
    %v3165 = vunpack.c.l.b16 %v3136
    %v3166 = vunpack.c.h.b16 %v3136
    %v3167 = vpack.c.b16 %v3147, %v3147
    %v3168 = vpack.c.b16 %v3148, %v3148
    %v3169 = vpack.c.b16 %v3149, %v3149
    %v3170 = vpack.c.b16 %v3150, %v3150
    %v3171 = vpack.c.b16 %v3151, %v3151
    %v3172 = vpack.c.b16 %v3152, %v3152
    %v3173 = vpack.c.b16 %v3153, %v3153
    %v3174 = vpack.c.b16 %v3154, %v3154
    %v3175 = vpack.c.b16 %v3155, %v3155
    %v3176 = vpack.c.b16 %v3156, %v3156
    %v3177 = vpack.c.b16 %v3157, %v3157
    %v3178 = vpack.c.b16 %v3158, %v3158
    %v3179 = vpack.c.b16 %v3159, %v3159
    %v3180 = vpack.c.b16 %v3160, %v3160
    %v3181 = vpack.c.b16 %v3161, %v3161
    %v3182 = vpack.c.b16 %v3162, %v3162
    %v3183 = vpack.c.b16 %v3163, %v3163
    %v3184 = vpack.c.b16 %v3164, %v3164
    %v3185 = vpack.c.b16 %v3165, %v3165
    %v3186 = vpack.c.b16 %v3166, %v3166
    %vm3207 = vcmask 388096
    %3208 = vst.msk [vmem:[#allocation8] sm:$0xf] %vm3207, %v3167
    %vm3209 = vcmask 385024
    %3210 = vst.msk [vmem:[#allocation8 + $0x4] sm:$0x1] %vm3209, %v3168
    %3211 = vst.msk [vmem:[#allocation8 + $0x8] sm:$0xf] %vm3207, %v3169
    %3212 = vst.msk [vmem:[#allocation8 + $0xc] sm:$0x1] %vm3209, %v3170
    %3213 = vst.msk [vmem:[#allocation8 + $0x10] sm:$0xf] %vm3207, %v3171
    %3214 = vst.msk [vmem:[#allocation8 + $0x14] sm:$0x1] %vm3209, %v3172
    %3215 = vst.msk [vmem:[#allocation8 + $0x18] sm:$0xf] %vm3207, %v3173
    %3216 = vst.msk [vmem:[#allocation8 + $0x1c] sm:$0x1] %vm3209, %v3174
    %3217 = vst.msk [vmem:[#allocation8 + $0x20] sm:$0xf] %vm3207, %v3175
    %3218 = vst.msk [vmem:[#allocation8 + $0x24] sm:$0x1] %vm3209, %v3176
    %3219 = vst.msk [vmem:[#allocation8 + $0x28] sm:$0xf] %vm3207, %v3177
    %3220 = vst.msk [vmem:[#allocation8 + $0x2c] sm:$0x1] %vm3209, %v3178
    %3221 = vst.msk [vmem:[#allocation8 + $0x30] sm:$0xf] %vm3207, %v3179
    %3222 = vst.msk [vmem:[#allocation8 + $0x34] sm:$0x1] %vm3209, %v3180
    %3223 = vst.msk [vmem:[#allocation8 + $0x38] sm:$0xf] %vm3207, %v3181
    %3224 = vst.msk [vmem:[#allocation8 + $0x3c] sm:$0x1] %vm3209, %v3182
    %3225 = vst.msk [vmem:[#allocation8 + $0x40] sm:$0xf] %vm3207, %v3183
    %3226 = vst.msk [vmem:[#allocation8 + $0x44] sm:$0x1] %vm3209, %v3184
    %3227 = vst.msk [vmem:[#allocation8 + $0x48] sm:$0xf] %vm3207, %v3185
    %3228 = vst.msk [vmem:[#allocation8 + $0x4c] sm:$0x1] %vm3209, %v3186
    // Predicated region
    $region18: #{tpu_custom_call.1} parent=1 // pred_check
      _
    $region19: #{tpu_custom_call.1} parent=1 // pred_check_branch
      %3230 = sbr.rel (0) target = $region21
    $region20: #{tpu_custom_call.1} parent=1 // pred_region
      %s3232 = ssub.s32 1280, 1280
      %3233 = vsyncadd [#allocation5], %s3232
      %s3234 = sshll.u32 [#allocation8], 4
      %s3235 = int_to_ptr.vmem [resolvable:$true] %s3234
      %3240 = dma.vmem_to_hbm [thread:$0]  %s3235, 1280, %s2, [#allocation5], 64, 64, 4
    $region21: #{tpu_custom_call.1} parent=1 // pred_fallthru
      _
    // Predicated region
    $region22: #{tpu_custom_call.1} parent=1 // pred_check
      _
    $region23: #{tpu_custom_call.1} parent=1 // pred_check_branch
      %3242 = sbr.rel (0) target = $region25
    $region24: #{tpu_custom_call.1} parent=1 // pred_region
      %3243 = dma.done [#allocation5], 1280
    $region25: #{tpu_custom_call.1} parent=1 // pred_fallthru
      _
    %3244 = vsyncpa [#allocation4], 1
    %3245 = vsyncpa [#allocation7], 1
    %3246 = vsyncpa [#allocation5], 1

</llo_original>
